<compile_context>
chip_gen: v7x
topology: tpu7x:2x2x1
jax: 0.10.0
libtpu: 0.0.40
codegen_flags: <defaults>
</compile_context>

<pallas_src>
import math
import functools

import jax
import jax.numpy as jnp
from jax.experimental import pallas as pl
from jax.experimental.pallas import tpu as pltpu


def _attn_kernel(x_ref, wq_ref, bq_ref, wk_ref, bk_ref, wd_ref, bd_ref,
                 wu_ref, bu_ref, o_ref, *, num_heads, attn_dim, seq_len, bblk):
    H, A, T = num_heads, attn_dim, seq_len
    E = x_ref.shape[-1]
    M = bblk * T

    # Fold (batch-block, seq) into the matmul M dim: (bblk, T, E) -> (M, E), bf16.
    x2d = x_ref[...].reshape(M, E)

    # Fused projections: single lane-wide MXU matmul each, f32 accumulation,
    # one packed-bias add each (biases are f32).
    q = jnp.dot(x2d, wq_ref[...], preferred_element_type=jnp.float32) + bq_ref[...]
    k = jnp.dot(x2d, wk_ref[...], preferred_element_type=jnp.float32) + bk_ref[...]
    vlow = jnp.dot(x2d, wd_ref[...], preferred_element_type=jnp.float32) + bd_ref[...]
    # Block-diagonal value-up matrix: one (M,H*R)@(H*R,H*A) matmul for all heads.
    v = jnp.dot(vlow.astype(jnp.bfloat16), wu_ref[...],
                preferred_element_type=jnp.float32) + bu_ref[...]        # (M, H*A)

    # (M, H*A) -> (H*bblk, T, A)  (head-major batch dim; only cheap lane slices,
    # leading-dim reshapes and a leading-dim concat -- no lane-splitting reshape).
    def to_heads(z):
        parts = [z[:, h * A:(h + 1) * A].reshape(bblk, T, A) for h in range(H)]
        return jnp.concatenate(parts, axis=0)

    qh = to_heads(q).astype(jnp.bfloat16)
    kh = to_heads(k).astype(jnp.bfloat16)
    vh = to_heads(v).astype(jnp.bfloat16)

    # Batched attention over all heads at once (1/sqrt(E) already folded into Wq/bq).
    att = jnp.einsum('btd,bsd->bts', qh, kh,
                     preferred_element_type=jnp.float32)                 # (H*bblk, T, T)

    # Anti-causal mask exactly as in the module: mask[t, s] = (s < t).
    row = jax.lax.broadcasted_iota(jnp.int32, (T, T), 0)
    col = jax.lax.broadcasted_iota(jnp.int32, (T, T), 1)
    att = jnp.where((col < row)[None, :, :], -1e30, att)

    # Numerically-stable softmax in f32; reciprocal on the EUP.
    m = jnp.max(att, axis=-1, keepdims=True)
    e = jnp.exp(att - m)
    p = e * pl.reciprocal(jnp.sum(e, axis=-1, keepdims=True), approx=True)
    # attention_dropout: identity (eval mode / p = 0)

    out = jnp.einsum('bts,bsd->btd', p.astype(jnp.bfloat16), vh,
                     preferred_element_type=jnp.float32)                 # (H*bblk, T, A)

    # Re-assemble heads along the lane dim and store ONCE (full-width store).
    out = out.reshape(H, bblk, T, A)
    out_full = jnp.concatenate([out[h] for h in range(H)], axis=-1)      # (bblk, T, H*A)
    o_ref[...] = out_full
    # residual_dropout1: identity (eval mode / p = 0)


def self_attention_separate(x, params, *, num_heads, attn_dim, block_batch=None):
    """x: (B, T, E) float32.  params: dict of stacked per-head weights."""
    B, T, E = x.shape
    H, A = num_heads, attn_dim
    wq, bq = params["wq"], params["bq"]   # (H, E, A), (H, 1, A)
    wk, bk = params["wk"], params["bk"]   # (H, E, A), (H, 1, A)
    wd, bd = params["wd"], params["bd"]   # (H, E, R), (H, 1, R)
    wu, bu = params["wu"], params["bu"]   # (H, R, A), (H, 1, A)
    R = wd.shape[-1]
    assert wq.shape[0] == H and wq.shape[-1] == A and H * A == E

    # Keep >= 2 "parallel" grid steps when B >= 2 (feeds both v7x TensorCores);
    # otherwise one big block (amortizes the ~0.35 us/step pipeline overhead).
    if block_batch is None:
        block_batch = B // 2 if (B >= 2 and B % 2 == 0) else B
    bblk = block_batch
    assert B % bblk == 0
    grid = (B // bblk,)

    scale = 1.0 / math.sqrt(E)   # module divides by sqrt(E), not sqrt(A)
    f32, bf16 = jnp.float32, jnp.bfloat16

    # ---- one-time weight packing (wrapper side) ----
    # Fuse heads along the output dim; weights already in (in, out) layout.
    wq_all = (jnp.transpose(wq, (1, 0, 2)).reshape(E, H * A) * scale).astype(bf16)
    bq_all = (bq.reshape(1, H * A) * scale).astype(f32)
    wk_all = jnp.transpose(wk, (1, 0, 2)).reshape(E, H * A).astype(bf16)
    bk_all = bk.reshape(1, H * A).astype(f32)
    wd_all = jnp.transpose(wd, (1, 0, 2)).reshape(E, H * R).astype(bf16)
    bd_all = bd.reshape(1, H * R).astype(f32)
    # Block-diagonal value-up: one (H*R, H*A) matmul instead of H (R, A) ones.
    wu_bd = jnp.zeros((H * R, H * A), f32)
    for h in range(H):
        wu_bd = wu_bd.at[h * R:(h + 1) * R, h * A:(h + 1) * A].set(wu[h])
    wu_bd = wu_bd.astype(bf16)
    bu_all = bu.reshape(1, H * A).astype(f32)

    x_bf16 = x.astype(bf16)   # halves x DMA bytes; matmuls use bf16 operands

    kernel = functools.partial(_attn_kernel, num_heads=H, attn_dim=A,
                               seq_len=T, bblk=bblk)

    def const(shape):   # full-array block, constant index map (loaded once)
        return pl.BlockSpec(shape, lambda b: (0,) * len(shape))

    out = pl.pallas_call(
        kernel,
        out_shape=jax.ShapeDtypeStruct((B, T, H * A), jnp.float32),
        grid_spec=pltpu.PrefetchScalarGridSpec(
            num_scalar_prefetch=0,
            grid=grid,
            in_specs=[
                pl.BlockSpec((bblk, T, E), lambda b: (b, 0, 0)),   # x (per batch block)
                const((E, H * A)), const((1, H * A)),              # Wq, bq (pre-scaled)
                const((E, H * A)), const((1, H * A)),              # Wk, bk
                const((E, H * R)), const((1, H * R)),              # Wd, bd
                const((H * R, H * A)), const((1, H * A)),          # Wu (block-diag), bu
            ],
            out_specs=pl.BlockSpec((bblk, T, H * A), lambda b: (b, 0, 0)),
        ),
        compiler_params=pltpu.CompilerParams(
            dimension_semantics=("parallel",),
            vmem_limit_bytes=64 * 1024 * 1024),
    )(x_bf16, wq_all, bq_all, wk_all, bk_all, wd_all, bd_all, wu_bd, bu_all)
    return out


def _reference(x, params):
    """Pure-JAX f32 reference mirroring the PyTorch forward (eval mode)."""
    B, T, E = x.shape
    wq, bq, wk, bk = params["wq"], params["bq"], params["wk"], params["bk"]
    wd, bd, wu, bu = params["wd"], params["bd"], params["wu"], params["bu"]
    H = wq.shape[0]
    mask = (jnp.arange(T)[None, :] < jnp.arange(T)[:, None])
    outs = []
    for h in range(H):
        q = x @ wq[h] + bq[h]
        k = x @ wk[h] + bk[h]
        att = (q @ jnp.swapaxes(k, -2, -1)) / math.sqrt(E)
        att = jnp.where(mask, -jnp.inf, att)
        att = jax.nn.softmax(att, axis=-1)
        v = (x @ wd[h] + bd[h]) @ wu[h] + bu[h]
        outs.append(att @ v)
    return jnp.concatenate(outs, axis=-1)


if __name__ == "__main__":
    # cfg: embedding_dimension=32, num_attention_heads=4, max_sequence_length=8,
    #      value_matrix_rank=4, dropout p's = 0 (eval mode).
    B, T, E, H, R = 2, 8, 32, 4, 4
    A = E // H

    key = jax.random.PRNGKey(0)
    ks = jax.random.split(key, 9)
    s = 0.02
    # Weights stored in (in, out) layout (i.e. PyTorch Linear weight transposed).
    params = {
        "wq": s * jax.random.normal(ks[0], (H, E, A), jnp.float32),
        "bq": s * jax.random.normal(ks[1], (H, 1, A), jnp.float32),
        "wk": s * jax.random.normal(ks[2], (H, E, A), jnp.float32),
        "bk": s * jax.random.normal(ks[3], (H, 1, A), jnp.float32),
        "wd": s * jax.random.normal(ks[4], (H, E, R), jnp.float32),
        "bd": s * jax.random.normal(ks[5], (H, 1, R), jnp.float32),
        "wu": s * jax.random.normal(ks[6], (H, R, A), jnp.float32),
        "bu": s * jax.random.normal(ks[7], (H, 1, A), jnp.float32),
    }
    x = jax.random.normal(ks[8], (B, T, E), jnp.float32)

    out = self_attention_separate(x, params, num_heads=H, attn_dim=A)
    out = jax.block_until_ready(out)

    ref = _reference(x, params)
    assert out.shape == (B, T, E), out.shape
    # bf16 matmul operands (f32 accumulation) + approx reciprocal -> modest tolerance.
    max_err = float(jnp.max(jnp.abs(out - ref)))
    assert jnp.allclose(out, ref, atol=3e-3, rtol=3e-2), f"mismatch vs reference: {max_err}"

    print("KERNEL_OK")
</pallas_src>

<mosaic_0001>
module attributes {stable_mosaic.version = 11 : i64} {
  func.func @_attn_kernel(%arg0: i32, %arg1: memref<1x8x32xbf16, #tpu.memory_space<vmem>>, %arg2: memref<32x32xbf16, #tpu.memory_space<vmem>>, %arg3: memref<1x32xf32, #tpu.memory_space<vmem>>, %arg4: memref<32x32xbf16, #tpu.memory_space<vmem>>, %arg5: memref<1x32xf32, #tpu.memory_space<vmem>>, %arg6: memref<32x16xbf16, #tpu.memory_space<vmem>>, %arg7: memref<1x16xf32, #tpu.memory_space<vmem>>, %arg8: memref<16x32xbf16, #tpu.memory_space<vmem>>, %arg9: memref<1x32xf32, #tpu.memory_space<vmem>>, %arg10: memref<1x8x32xf32, #tpu.memory_space<vmem>>) attributes {dimension_semantics = [#tpu.dimension_semantics<parallel>], iteration_bounds = array<i64: 2>, scalar_prefetch = 0 : i64, scratch_operands = 0 : i64, tpu.core_type = #tpu.core_type<tc>, window_params = [{transform_indices = @transform_0, window_bounds = array<i64: 1, 8, 32>}, {pipeline_mode = #tpu.pipeline_mode<synchronous>, transform_indices = @transform_1, window_bounds = array<i64: 32, 32>}, {pipeline_mode = #tpu.pipeline_mode<synchronous>, transform_indices = @transform_2, window_bounds = array<i64: 1, 32>}, {pipeline_mode = #tpu.pipeline_mode<synchronous>, transform_indices = @transform_3, window_bounds = array<i64: 32, 32>}, {pipeline_mode = #tpu.pipeline_mode<synchronous>, transform_indices = @transform_4, window_bounds = array<i64: 1, 32>}, {pipeline_mode = #tpu.pipeline_mode<synchronous>, transform_indices = @transform_5, window_bounds = array<i64: 32, 16>}, {pipeline_mode = #tpu.pipeline_mode<synchronous>, transform_indices = @transform_6, window_bounds = array<i64: 1, 16>}, {pipeline_mode = #tpu.pipeline_mode<synchronous>, transform_indices = @transform_7, window_bounds = array<i64: 16, 32>}, {pipeline_mode = #tpu.pipeline_mode<synchronous>, transform_indices = @transform_8, window_bounds = array<i64: 1, 32>}, {transform_indices = @transform_9, window_bounds = array<i64: 1, 8, 32>}]} {
    %c0 = arith.constant 0 : index
    %c0_0 = arith.constant 0 : index
    %c0_1 = arith.constant 0 : index
    %0 = vector.load %arg1[%c0, %c0_0, %c0_1] : memref<1x8x32xbf16, #tpu.memory_space<vmem>>, vector<1x8x32xbf16>
    %1 = vector.shape_cast %0 : vector<1x8x32xbf16> to vector<8x32xbf16>
    %c0_2 = arith.constant 0 : index
    %c0_3 = arith.constant 0 : index
    %2 = vector.load %arg2[%c0_2, %c0_3] : memref<32x32xbf16, #tpu.memory_space<vmem>>, vector<32x32xbf16>
    %cst = arith.constant dense<0.000000e+00> : vector<8x32xf32>
    %3 = tpu.matmul %1, %2, %cst {dimension_numbers = #tpu.dot_dimension_numbers<[1], [0], [0], [1], [0, 0, 1, 1], [], []>} : vector<8x32xbf16>, vector<32x32xbf16>, vector<8x32xf32> -> vector<8x32xf32>
    %c0_4 = arith.constant 0 : index
    %c0_5 = arith.constant 0 : index
    %4 = vector.load %arg3[%c0_4, %c0_5] : memref<1x32xf32, #tpu.memory_space<vmem>>, vector<1x32xf32>
    %5 = vector.broadcast %4 : vector<1x32xf32> to vector<8x32xf32>
    %6 = arith.addf %3, %5 : vector<8x32xf32>
    %c0_6 = arith.constant 0 : index
    %c0_7 = arith.constant 0 : index
    %7 = vector.load %arg4[%c0_6, %c0_7] : memref<32x32xbf16, #tpu.memory_space<vmem>>, vector<32x32xbf16>
    %cst_8 = arith.constant dense<0.000000e+00> : vector<8x32xf32>
    %8 = tpu.matmul %1, %7, %cst_8 {dimension_numbers = #tpu.dot_dimension_numbers<[1], [0], [0], [1], [0, 0, 1, 1], [], []>} : vector<8x32xbf16>, vector<32x32xbf16>, vector<8x32xf32> -> vector<8x32xf32>
    %c0_9 = arith.constant 0 : index
    %c0_10 = arith.constant 0 : index
    %9 = vector.load %arg5[%c0_9, %c0_10] : memref<1x32xf32, #tpu.memory_space<vmem>>, vector<1x32xf32>
    %10 = vector.broadcast %9 : vector<1x32xf32> to vector<8x32xf32>
    %11 = arith.addf %8, %10 : vector<8x32xf32>
    %c0_11 = arith.constant 0 : index
    %c0_12 = arith.constant 0 : index
    %12 = vector.load %arg6[%c0_11, %c0_12] : memref<32x16xbf16, #tpu.memory_space<vmem>>, vector<32x16xbf16>
    %cst_13 = arith.constant dense<0.000000e+00> : vector<8x16xf32>
    %13 = tpu.matmul %1, %12, %cst_13 {dimension_numbers = #tpu.dot_dimension_numbers<[1], [0], [0], [1], [0, 0, 1, 1], [], []>} : vector<8x32xbf16>, vector<32x16xbf16>, vector<8x16xf32> -> vector<8x16xf32>
    %c0_14 = arith.constant 0 : index
    %c0_15 = arith.constant 0 : index
    %14 = vector.load %arg7[%c0_14, %c0_15] : memref<1x16xf32, #tpu.memory_space<vmem>>, vector<1x16xf32>
    %15 = vector.broadcast %14 : vector<1x16xf32> to vector<8x16xf32>
    %16 = arith.addf %13, %15 : vector<8x16xf32>
    %17 = arith.truncf %16 : vector<8x16xf32> to vector<8x16xbf16>
    %c0_16 = arith.constant 0 : index
    %c0_17 = arith.constant 0 : index
    %18 = vector.load %arg8[%c0_16, %c0_17] : memref<16x32xbf16, #tpu.memory_space<vmem>>, vector<16x32xbf16>
    %cst_18 = arith.constant dense<0.000000e+00> : vector<8x32xf32>
    %19 = tpu.matmul %17, %18, %cst_18 {dimension_numbers = #tpu.dot_dimension_numbers<[1], [0], [0], [1], [0, 0, 1, 1], [], []>} : vector<8x16xbf16>, vector<16x32xbf16>, vector<8x32xf32> -> vector<8x32xf32>
    %c0_19 = arith.constant 0 : index
    %c0_20 = arith.constant 0 : index
    %20 = vector.load %arg9[%c0_19, %c0_20] : memref<1x32xf32, #tpu.memory_space<vmem>>, vector<1x32xf32>
    %21 = vector.broadcast %20 : vector<1x32xf32> to vector<8x32xf32>
    %22 = arith.addf %19, %21 : vector<8x32xf32>
    %23 = vector.extract_strided_slice %6 {offsets = [0, 0], sizes = [8, 8], strides = [1, 1]} : vector<8x32xf32> to vector<8x8xf32>
    %24 = vector.shape_cast %23 : vector<8x8xf32> to vector<1x8x8xf32>
    %25 = vector.extract_strided_slice %6 {offsets = [0, 8], sizes = [8, 8], strides = [1, 1]} : vector<8x32xf32> to vector<8x8xf32>
    %26 = vector.shape_cast %25 : vector<8x8xf32> to vector<1x8x8xf32>
    %27 = vector.extract_strided_slice %6 {offsets = [0, 16], sizes = [8, 8], strides = [1, 1]} : vector<8x32xf32> to vector<8x8xf32>
    %28 = vector.shape_cast %27 : vector<8x8xf32> to vector<1x8x8xf32>
    %29 = vector.extract_strided_slice %6 {offsets = [0, 24], sizes = [8, 8], strides = [1, 1]} : vector<8x32xf32> to vector<8x8xf32>
    %30 = vector.shape_cast %29 : vector<8x8xf32> to vector<1x8x8xf32>
    %31 = tpu.concatenate %24, %26, %28, %30 in 0 : vector<1x8x8xf32>, vector<1x8x8xf32>, vector<1x8x8xf32>, vector<1x8x8xf32> -> vector<4x8x8xf32>
    %32 = arith.truncf %31 : vector<4x8x8xf32> to vector<4x8x8xbf16>
    %33 = vector.extract_strided_slice %11 {offsets = [0, 0], sizes = [8, 8], strides = [1, 1]} : vector<8x32xf32> to vector<8x8xf32>
    %34 = vector.shape_cast %33 : vector<8x8xf32> to vector<1x8x8xf32>
    %35 = vector.extract_strided_slice %11 {offsets = [0, 8], sizes = [8, 8], strides = [1, 1]} : vector<8x32xf32> to vector<8x8xf32>
    %36 = vector.shape_cast %35 : vector<8x8xf32> to vector<1x8x8xf32>
    %37 = vector.extract_strided_slice %11 {offsets = [0, 16], sizes = [8, 8], strides = [1, 1]} : vector<8x32xf32> to vector<8x8xf32>
    %38 = vector.shape_cast %37 : vector<8x8xf32> to vector<1x8x8xf32>
    %39 = vector.extract_strided_slice %11 {offsets = [0, 24], sizes = [8, 8], strides = [1, 1]} : vector<8x32xf32> to vector<8x8xf32>
    %40 = vector.shape_cast %39 : vector<8x8xf32> to vector<1x8x8xf32>
    %41 = tpu.concatenate %34, %36, %38, %40 in 0 : vector<1x8x8xf32>, vector<1x8x8xf32>, vector<1x8x8xf32>, vector<1x8x8xf32> -> vector<4x8x8xf32>
    %42 = arith.truncf %41 : vector<4x8x8xf32> to vector<4x8x8xbf16>
    %43 = vector.extract_strided_slice %22 {offsets = [0, 0], sizes = [8, 8], strides = [1, 1]} : vector<8x32xf32> to vector<8x8xf32>
    %44 = vector.shape_cast %43 : vector<8x8xf32> to vector<1x8x8xf32>
    %45 = vector.extract_strided_slice %22 {offsets = [0, 8], sizes = [8, 8], strides = [1, 1]} : vector<8x32xf32> to vector<8x8xf32>
    %46 = vector.shape_cast %45 : vector<8x8xf32> to vector<1x8x8xf32>
    %47 = vector.extract_strided_slice %22 {offsets = [0, 16], sizes = [8, 8], strides = [1, 1]} : vector<8x32xf32> to vector<8x8xf32>
    %48 = vector.shape_cast %47 : vector<8x8xf32> to vector<1x8x8xf32>
    %49 = vector.extract_strided_slice %22 {offsets = [0, 24], sizes = [8, 8], strides = [1, 1]} : vector<8x32xf32> to vector<8x8xf32>
    %50 = vector.shape_cast %49 : vector<8x8xf32> to vector<1x8x8xf32>
    %51 = tpu.concatenate %44, %46, %48, %50 in 0 : vector<1x8x8xf32>, vector<1x8x8xf32>, vector<1x8x8xf32>, vector<1x8x8xf32> -> vector<4x8x8xf32>
    %52 = arith.truncf %51 : vector<4x8x8xf32> to vector<4x8x8xbf16>
    "tpu.trace_start"() <{level = 10 : i32, message = "btd,bsd->bts"}> : () -> ()
    %cst_21 = arith.constant dense<0.000000e+00> : vector<4x8x8xf32>
    %53 = tpu.matmul %32, %42, %cst_21 {dimension_numbers = #tpu.dot_dimension_numbers<[2], [2], [1], [1], [0, 0, 0, 1, 1, 1], [0], [0]>} : vector<4x8x8xbf16>, vector<4x8x8xbf16>, vector<4x8x8xf32> -> vector<4x8x8xf32>
    "tpu.trace_stop"() : () -> ()
    %54 = tpu.iota {dimensions = array<i32: 0>} : vector<8x8xi32>
    %55 = tpu.iota {dimensions = array<i32: 1>} : vector<8x8xi32>
    %56 = arith.cmpi slt, %55, %54 : vector<8x8xi32>
    %57 = vector.shape_cast %56 : vector<8x8xi1> to vector<1x8x8xi1>
    %cst_22 = arith.constant -1.000000e+30 : f32
    %58 = vector.shape_cast %57 : vector<1x8x8xi1> to vector<1x8x8xi1>
    %59 = vector.broadcast %58 : vector<1x8x8xi1> to vector<4x8x8xi1>
    %60 = vector.broadcast %cst_22 : f32 to vector<4x8x8xf32>
    %61 = arith.select %59, %60, %53 : vector<4x8x8xi1>, vector<4x8x8xf32>
    %cst_23 = arith.constant dense<0xFF800000> : vector<4x8xf32>
    %62 = vector.multi_reduction <maximumf>, %61, %cst_23 [2] : vector<4x8x8xf32> to vector<4x8xf32>
    %63 = vector.shape_cast %62 : vector<4x8xf32> to vector<4x8x1xf32>
    %64 = vector.broadcast %63 : vector<4x8x1xf32> to vector<4x8x8xf32>
    %65 = arith.subf %61, %64 : vector<4x8x8xf32>
    %66 = math.exp %65 : vector<4x8x8xf32>
    %cst_24 = arith.constant dense<0.000000e+00> : vector<4x8xf32>
    %67 = vector.multi_reduction <add>, %66, %cst_24 [2] : vector<4x8x8xf32> to vector<4x8xf32>
    %68 = vector.shape_cast %67 : vector<4x8xf32> to vector<4x8x1xf32>
    %69 = tpu.reciprocal %68 {approx = true} : vector<4x8x1xf32> -> vector<4x8x1xf32>
    %70 = vector.broadcast %69 : vector<4x8x1xf32> to vector<4x8x8xf32>
    %71 = arith.mulf %66, %70 : vector<4x8x8xf32>
    %72 = arith.truncf %71 : vector<4x8x8xf32> to vector<4x8x8xbf16>
    "tpu.trace_start"() <{level = 10 : i32, message = "bts,bsd->btd"}> : () -> ()
    %cst_25 = arith.constant dense<0.000000e+00> : vector<4x8x8xf32>
    %73 = tpu.matmul %72, %52, %cst_25 {dimension_numbers = #tpu.dot_dimension_numbers<[2], [1], [1], [2], [0, 0, 0, 1, 1, 2], [0], [0]>} : vector<4x8x8xbf16>, vector<4x8x8xbf16>, vector<4x8x8xf32> -> vector<4x8x8xf32>
    "tpu.trace_stop"() : () -> ()
    %74 = vector.shape_cast %73 : vector<4x8x8xf32> to vector<4x1x8x8xf32>
    %75 = vector.extract_strided_slice %74 {offsets = [0, 0, 0, 0], sizes = [1, 1, 8, 8], strides = [1, 1, 1, 1]} : vector<4x1x8x8xf32> to vector<1x1x8x8xf32>
    %76 = vector.shape_cast %75 : vector<1x1x8x8xf32> to vector<1x8x8xf32>
    %77 = vector.extract_strided_slice %74 {offsets = [1, 0, 0, 0], sizes = [1, 1, 8, 8], strides = [1, 1, 1, 1]} : vector<4x1x8x8xf32> to vector<1x1x8x8xf32>
    %78 = vector.shape_cast %77 : vector<1x1x8x8xf32> to vector<1x8x8xf32>
    %79 = vector.extract_strided_slice %74 {offsets = [2, 0, 0, 0], sizes = [1, 1, 8, 8], strides = [1, 1, 1, 1]} : vector<4x1x8x8xf32> to vector<1x1x8x8xf32>
    %80 = vector.shape_cast %79 : vector<1x1x8x8xf32> to vector<1x8x8xf32>
    %81 = vector.extract_strided_slice %74 {offsets = [3, 0, 0, 0], sizes = [1, 1, 8, 8], strides = [1, 1, 1, 1]} : vector<4x1x8x8xf32> to vector<1x1x8x8xf32>
    %82 = vector.shape_cast %81 : vector<1x1x8x8xf32> to vector<1x8x8xf32>
    %83 = tpu.concatenate %76, %78, %80, %82 in 2 : vector<1x8x8xf32>, vector<1x8x8xf32>, vector<1x8x8xf32>, vector<1x8x8xf32> -> vector<1x8x32xf32>
    %c0_26 = arith.constant 0 : index
    %c0_27 = arith.constant 0 : index
    %c0_28 = arith.constant 0 : index
    %84 = vector.load %arg10[%c0_26, %c0_27, %c0_28] : memref<1x8x32xf32, #tpu.memory_space<vmem>>, vector<1x8x32xf32>
    tpu.vector_store %arg10[%c0_26, %c0_27, %c0_28], %83 {strides = array<i32>} : memref<1x8x32xf32, #tpu.memory_space<vmem>>, vector<1x8x32xf32>,
    return
  }
  func.func @transform_0(%arg0: i32) -> (i32, i32, i32) {
    %c0_i32 = arith.constant 0 : i32
    %c0_i32_0 = arith.constant 0 : i32
    %c0_i32_1 = arith.constant 0 : i32
    return %arg0, %c0_i32, %c0_i32_0 : i32, i32, i32
  }
  func.func @transform_1(%arg0: i32) -> (i32, i32) {
    %c0_i32 = arith.constant 0 : i32
    %c0_i32_0 = arith.constant 0 : i32
    %c0_i32_1 = arith.constant 0 : i32
    return %c0_i32, %c0_i32_0 : i32, i32
  }
  func.func @transform_2(%arg0: i32) -> (i32, i32) {
    %c0_i32 = arith.constant 0 : i32
    %c0_i32_0 = arith.constant 0 : i32
    %c0_i32_1 = arith.constant 0 : i32
    return %c0_i32, %c0_i32_0 : i32, i32
  }
  func.func @transform_3(%arg0: i32) -> (i32, i32) {
    %c0_i32 = arith.constant 0 : i32
    %c0_i32_0 = arith.constant 0 : i32
    %c0_i32_1 = arith.constant 0 : i32
    return %c0_i32, %c0_i32_0 : i32, i32
  }
  func.func @transform_4(%arg0: i32) -> (i32, i32) {
    %c0_i32 = arith.constant 0 : i32
    %c0_i32_0 = arith.constant 0 : i32
    %c0_i32_1 = arith.constant 0 : i32
    return %c0_i32, %c0_i32_0 : i32, i32
  }
  func.func @transform_5(%arg0: i32) -> (i32, i32) {
    %c0_i32 = arith.constant 0 : i32
    %c0_i32_0 = arith.constant 0 : i32
    %c0_i32_1 = arith.constant 0 : i32
    return %c0_i32, %c0_i32_0 : i32, i32
  }
  func.func @transform_6(%arg0: i32) -> (i32, i32) {
    %c0_i32 = arith.constant 0 : i32
    %c0_i32_0 = arith.constant 0 : i32
    %c0_i32_1 = arith.constant 0 : i32
    return %c0_i32, %c0_i32_0 : i32, i32
  }
  func.func @transform_7(%arg0: i32) -> (i32, i32) {
    %c0_i32 = arith.constant 0 : i32
    %c0_i32_0 = arith.constant 0 : i32
    %c0_i32_1 = arith.constant 0 : i32
    return %c0_i32, %c0_i32_0 : i32, i32
  }
  func.func @transform_8(%arg0: i32) -> (i32, i32) {
    %c0_i32 = arith.constant 0 : i32
    %c0_i32_0 = arith.constant 0 : i32
    %c0_i32_1 = arith.constant 0 : i32
    return %c0_i32, %c0_i32_0 : i32, i32
  }
  func.func @transform_9(%arg0: i32) -> (i32, i32, i32) {
    %c0_i32 = arith.constant 0 : i32
    %c0_i32_0 = arith.constant 0 : i32
    %c0_i32_1 = arith.constant 0 : i32
    return %arg0, %c0_i32, %c0_i32_0 : i32, i32, i32
  }
}

</mosaic_0001>

<llo_original>
// kernel: tpu_custom_call.1
$region0: #{tpu_custom_call.1}
  #allocation0 [shape = 'u32[]', space=smem, size = 0x4, offset = 0x4, fixed_abs, tag = 'smem constant byte address 0x4 - core index']
  #allocation1 [shape = 'u32[144,128]{1,0:T(1,128)}', space=vmem, size = 0x12000, scoped, tag = 'internal scratch']
  %s0 = inlined_call_operand.hbm [shape: bf16[2,8,32], index: 0, kind: input, shape index: {}]
  %s1 = inlined_call_operand.hbm [shape: bf16[32,32], index: 1, kind: input, shape index: {}]
  %s2 = inlined_call_operand.hbm [shape: f32[1,32], index: 2, kind: input, shape index: {}]
  %s3 = inlined_call_operand.hbm [shape: bf16[32,32], index: 3, kind: input, shape index: {}]
  %s4 = inlined_call_operand.hbm [shape: f32[1,32], index: 4, kind: input, shape index: {}]
  %s5 = inlined_call_operand.hbm [shape: bf16[32,16], index: 5, kind: input, shape index: {}]
  %s6 = inlined_call_operand.hbm [shape: f32[1,16], index: 6, kind: input, shape index: {}]
  %s7 = inlined_call_operand.hbm [shape: bf16[16,32], index: 7, kind: input, shape index: {}]
  %s8 = inlined_call_operand.hbm [shape: f32[1,32], index: 8, kind: input, shape index: {}]
  %s9 = inlined_call_operand.hbm [shape: f32[2,8,32], index: 9, kind: output, shape index: {}]
  %s10 = sld [smem:[#allocation0]]
  $region105: #{tpu_custom_call.1} parent=0
    _
  %s12 = ssub.s32 1, %s10
  %s13 = scalar_select 0, %s12, %s10
  $region1: #{tpu_custom_call.1} parent=0
    #allocation2 [shape = 'u8[4096]{0}', space=vmem, size = 0x1000, scoped, tag = 'input window, operand 0']
    #allocation3 [shape = 's32[2]{0}', space=sflag, size = 0x8, scoped, tag = 'scoped memory for tpu_custom_call.1']
    #allocation4 [shape = 's32[2]{0}', space=sflag, size = 0x8, scoped, tag = 'scoped memory for tpu_custom_call.1']
    #allocation5 [shape = 'u8[8192]{0}', space=vmem, size = 0x2000, scoped, tag = 'input window, operand 1, single buffered']
    #allocation6 [shape = 's32[1]{0}', space=sflag, size = 0x4, scoped, tag = 'scoped memory for tpu_custom_call.1']
    #allocation7 [shape = 'u8[512]{0}', space=vmem, size = 0x400, scoped, tag = 'input window, operand 2, single buffered']
    #allocation8 [shape = 'u8[8192]{0}', space=vmem, size = 0x2000, scoped, tag = 'input window, operand 3, single buffered']
    #allocation9 [shape = 's32[1]{0}', space=sflag, size = 0x4, scoped, tag = 'scoped memory for tpu_custom_call.1']
    #allocation10 [shape = 'u8[512]{0}', space=vmem, size = 0x400, scoped, tag = 'input window, operand 4, single buffered']
    #allocation11 [shape = 'u8[8192]{0}', space=vmem, size = 0x2000, scoped, tag = 'input window, operand 5, single buffered']
    #allocation12 [shape = 's32[1]{0}', space=sflag, size = 0x4, scoped, tag = 'scoped memory for tpu_custom_call.1']
    #allocation13 [shape = 'u8[512]{0}', space=vmem, size = 0x400, scoped, tag = 'input window, operand 6, single buffered']
    #allocation14 [shape = 'u8[4096]{0}', space=vmem, size = 0x1000, scoped, tag = 'input window, operand 7, single buffered']
    #allocation15 [shape = 's32[1]{0}', space=sflag, size = 0x4, scoped, tag = 'scoped memory for tpu_custom_call.1']
    #allocation16 [shape = 'u8[512]{0}', space=vmem, size = 0x400, scoped, tag = 'input window, operand 8, single buffered']
    #allocation17 [shape = 'u8[8192]{0}', space=vmem, size = 0x2000, scoped, tag = 'output window, operand 0']
    %14 = vsyncpa [#allocation3], 0
    %s15 = scalar_lea.sflag [#allocation3], 1
    %16 = vsyncpa %s15, 0
    %17 = vsyncpa [#allocation6], 0
    %18 = vsyncpa [#allocation9], 0
    %19 = vsyncpa [#allocation12], 0
    %20 = vsyncpa [#allocation15], 0
    %21 = vsyncpa [#allocation4], 0
    %s22 = scalar_lea.sflag [#allocation4], 1
    %23 = vsyncpa %s22, 0
    loop: start=0, step=1, limit=4
    $region2: #{tpu_custom_call.1} parent=1 // loop_pre_header
      _
    $region3: #{tpu_custom_call.1} parent=1 // loop_header
      %s25 = sphi 0, %s29
      %p26 = scmp.ge.s32.totalorder %s25, 4
      %s35 = sphi 0, %s37
      %s38 = sphi 0, %s35
      %s39 = sphi 0, %s38
      %s55 = sphi 0, %s39
      %s59 = sphi 0, %s59
      %s61 = sphi 0, %s59
      %s62 = sphi 0, %s61
      %s76 = sphi 0, %s62
      %s80 = sphi 0, %s80
      %s82 = sphi 0, %s80
      %s83 = sphi 0, %s82
      %s97 = sphi 0, %s83
      %s101 = sphi 0, %s101
      %s103 = sphi 0, %s101
      %s104 = sphi 0, %s103
      %s118 = sphi 0, %s104
      %s122 = sphi 0, %s122
      %s124 = sphi 0, %s122
      %s125 = sphi 0, %s124
      %s139 = sphi 0, %s125
      %s143 = sphi 0, %s143
      %s145 = sphi 0, %s143
      %s146 = sphi 0, %s145
      %s160 = sphi 0, %s146
      %s164 = sphi 0, %s164
      %s166 = sphi 0, %s164
      %s167 = sphi 0, %s166
      %s181 = sphi 0, %s167
      %s185 = sphi 0, %s185
      %s187 = sphi 0, %s185
      %s188 = sphi 0, %s187
      %s202 = sphi 0, %s188
      %s206 = sphi 0, %s206
      %s208 = sphi 0, %s206
      %s209 = sphi 0, %s208
      %s223 = sphi 0, %s209
      %s229 = sphi 0, %s231
      %s232 = sphi 0, %s229
      %s233 = sphi 0, %s232
      %s249 = sphi 0, %s233
    $region4: #{tpu_custom_call.1} parent=1 // loop_header_branch
      %28 = sbr.rel (%p26) target = $region8
    $region5: #{tpu_custom_call.1} parent=1 // loop_body
      %s30 = ssub.s32 %s25, 1
      %s31 = ssub.s32 %s25, 2
      %s32 = sadd.s32 %s25, 1
      %s33 = ssub.s32 %s25, %s32
      %p34 = scmp.eq.s32.totalorder %s33, 0
      %s36 = sadd.s32 %s35, 1
      %s37 = scalar_select %p34, %s35, %s36
      %p40 = pneg %p34
      %p41 = scmp.eq.s32.totalorder %s25, 1
      %p42 = por %p40, %p41
      %p43 = scmp.ne.s32.totalorder %s35, %s38
      %p44 = scmp.eq.s32.totalorder %s25, 0
      %p45 = por %p43, %p44
      %p46 = scmp.ne.s32.totalorder %s35, %s38
      %p47 = scmp.eq.s32.totalorder %s30, 1
      %p48 = por %p46, %p47
      %p49 = scmp.ne.s32.totalorder %s38, %s39
      %p50 = scmp.eq.s32.totalorder %s30, 0
      %p51 = por %p49, %p50
      %p52 = scmp.ne.s32.totalorder %s38, %s39
      %p53 = scmp.eq.s32.totalorder %s31, 1
      %p54 = por %p52, %p53
      %p56 = scmp.ne.s32.totalorder %s39, %s55
      %p57 = scmp.eq.s32.totalorder %s31, 0
      %p58 = por %p56, %p57
      %s60 = sadd.s32 %s59, 1
      %p63 = scmp.eq.s32.totalorder %s25, 1
      %p64 = scmp.ne.s32.totalorder %s59, %s61
      %p65 = scmp.eq.s32.totalorder %s25, 0
      %p66 = por %p64, %p65
      %p67 = scmp.ne.s32.totalorder %s59, %s61
      %p68 = scmp.eq.s32.totalorder %s30, 1
      %p69 = por %p67, %p68
      %p70 = scmp.ne.s32.totalorder %s61, %s62
      %p71 = scmp.eq.s32.totalorder %s30, 0
      %p72 = por %p70, %p71
      %p73 = scmp.ne.s32.totalorder %s61, %s62
      %p74 = scmp.eq.s32.totalorder %s31, 1
      %p75 = por %p73, %p74
      %p77 = scmp.ne.s32.totalorder %s62, %s76
      %p78 = scmp.eq.s32.totalorder %s31, 0
      %p79 = por %p77, %p78
      %s81 = sadd.s32 %s80, 1
      %p84 = scmp.eq.s32.totalorder %s25, 1
      %p85 = scmp.ne.s32.totalorder %s80, %s82
      %p86 = scmp.eq.s32.totalorder %s25, 0
      %p87 = por %p85, %p86
      %p88 = scmp.ne.s32.totalorder %s80, %s82
      %p89 = scmp.eq.s32.totalorder %s30, 1
      %p90 = por %p88, %p89
      %p91 = scmp.ne.s32.totalorder %s82, %s83
      %p92 = scmp.eq.s32.totalorder %s30, 0
      %p93 = por %p91, %p92
      %p94 = scmp.ne.s32.totalorder %s82, %s83
      %p95 = scmp.eq.s32.totalorder %s31, 1
      %p96 = por %p94, %p95
      %p98 = scmp.ne.s32.totalorder %s83, %s97
      %p99 = scmp.eq.s32.totalorder %s31, 0
      %p100 = por %p98, %p99
      %s102 = sadd.s32 %s101, 1
      %p105 = scmp.eq.s32.totalorder %s25, 1
      %p106 = scmp.ne.s32.totalorder %s101, %s103
      %p107 = scmp.eq.s32.totalorder %s25, 0
      %p108 = por %p106, %p107
      %p109 = scmp.ne.s32.totalorder %s101, %s103
      %p110 = scmp.eq.s32.totalorder %s30, 1
      %p111 = por %p109, %p110
      %p112 = scmp.ne.s32.totalorder %s103, %s104
      %p113 = scmp.eq.s32.totalorder %s30, 0
      %p114 = por %p112, %p113
      %p115 = scmp.ne.s32.totalorder %s103, %s104
      %p116 = scmp.eq.s32.totalorder %s31, 1
      %p117 = por %p115, %p116
      %p119 = scmp.ne.s32.totalorder %s104, %s118
      %p120 = scmp.eq.s32.totalorder %s31, 0
      %p121 = por %p119, %p120
      %s123 = sadd.s32 %s122, 1
      %p126 = scmp.eq.s32.totalorder %s25, 1
      %p127 = scmp.ne.s32.totalorder %s122, %s124
      %p128 = scmp.eq.s32.totalorder %s25, 0
      %p129 = por %p127, %p128
      %p130 = scmp.ne.s32.totalorder %s122, %s124
      %p131 = scmp.eq.s32.totalorder %s30, 1
      %p132 = por %p130, %p131
      %p133 = scmp.ne.s32.totalorder %s124, %s125
      %p134 = scmp.eq.s32.totalorder %s30, 0
      %p135 = por %p133, %p134
      %p136 = scmp.ne.s32.totalorder %s124, %s125
      %p137 = scmp.eq.s32.totalorder %s31, 1
      %p138 = por %p136, %p137
      %p140 = scmp.ne.s32.totalorder %s125, %s139
      %p141 = scmp.eq.s32.totalorder %s31, 0
      %p142 = por %p140, %p141
      %s144 = sadd.s32 %s143, 1
      %p147 = scmp.eq.s32.totalorder %s25, 1
      %p148 = scmp.ne.s32.totalorder %s143, %s145
      %p149 = scmp.eq.s32.totalorder %s25, 0
      %p150 = por %p148, %p149
      %p151 = scmp.ne.s32.totalorder %s143, %s145
      %p152 = scmp.eq.s32.totalorder %s30, 1
      %p153 = por %p151, %p152
      %p154 = scmp.ne.s32.totalorder %s145, %s146
      %p155 = scmp.eq.s32.totalorder %s30, 0
      %p156 = por %p154, %p155
      %p157 = scmp.ne.s32.totalorder %s145, %s146
      %p158 = scmp.eq.s32.totalorder %s31, 1
      %p159 = por %p157, %p158
      %p161 = scmp.ne.s32.totalorder %s146, %s160
      %p162 = scmp.eq.s32.totalorder %s31, 0
      %p163 = por %p161, %p162
      %s165 = sadd.s32 %s164, 1
      %p168 = scmp.eq.s32.totalorder %s25, 1
      %p169 = scmp.ne.s32.totalorder %s164, %s166
      %p170 = scmp.eq.s32.totalorder %s25, 0
      %p171 = por %p169, %p170
      %p172 = scmp.ne.s32.totalorder %s164, %s166
      %p173 = scmp.eq.s32.totalorder %s30, 1
      %p174 = por %p172, %p173
      %p175 = scmp.ne.s32.totalorder %s166, %s167
      %p176 = scmp.eq.s32.totalorder %s30, 0
      %p177 = por %p175, %p176
      %p178 = scmp.ne.s32.totalorder %s166, %s167
      %p179 = scmp.eq.s32.totalorder %s31, 1
      %p180 = por %p178, %p179
      %p182 = scmp.ne.s32.totalorder %s167, %s181
      %p183 = scmp.eq.s32.totalorder %s31, 0
      %p184 = por %p182, %p183
      %s186 = sadd.s32 %s185, 1
      %p189 = scmp.eq.s32.totalorder %s25, 1
      %p190 = scmp.ne.s32.totalorder %s185, %s187
      %p191 = scmp.eq.s32.totalorder %s25, 0
      %p192 = por %p190, %p191
      %p193 = scmp.ne.s32.totalorder %s185, %s187
      %p194 = scmp.eq.s32.totalorder %s30, 1
      %p195 = por %p193, %p194
      %p196 = scmp.ne.s32.totalorder %s187, %s188
      %p197 = scmp.eq.s32.totalorder %s30, 0
      %p198 = por %p196, %p197
      %p199 = scmp.ne.s32.totalorder %s187, %s188
      %p200 = scmp.eq.s32.totalorder %s31, 1
      %p201 = por %p199, %p200
      %p203 = scmp.ne.s32.totalorder %s188, %s202
      %p204 = scmp.eq.s32.totalorder %s31, 0
      %p205 = por %p203, %p204
      %s207 = sadd.s32 %s206, 1
      %p210 = scmp.eq.s32.totalorder %s25, 1
      %p211 = scmp.ne.s32.totalorder %s206, %s208
      %p212 = scmp.eq.s32.totalorder %s25, 0
      %p213 = por %p211, %p212
      %p214 = scmp.ne.s32.totalorder %s206, %s208
      %p215 = scmp.eq.s32.totalorder %s30, 1
      %p216 = por %p214, %p215
      %p217 = scmp.ne.s32.totalorder %s208, %s209
      %p218 = scmp.eq.s32.totalorder %s30, 0
      %p219 = por %p217, %p218
      %p220 = scmp.ne.s32.totalorder %s208, %s209
      %p221 = scmp.eq.s32.totalorder %s31, 1
      %p222 = por %p220, %p221
      %p224 = scmp.ne.s32.totalorder %s209, %s223
      %p225 = scmp.eq.s32.totalorder %s31, 0
      %p226 = por %p224, %p225
      %s227 = ssub.s32 %s25, %s32
      %p228 = scmp.eq.s32.totalorder %s227, 0
      %s230 = sadd.s32 %s229, 1
      %s231 = scalar_select %p228, %s229, %s230
      %p234 = pneg %p228
      %p235 = scmp.eq.s32.totalorder %s25, 1
      %p236 = por %p234, %p235
      %p237 = scmp.ne.s32.totalorder %s229, %s232
      %p238 = scmp.eq.s32.totalorder %s25, 0
      %p239 = por %p237, %p238
      %p240 = scmp.ne.s32.totalorder %s229, %s232
      %p241 = scmp.eq.s32.totalorder %s30, 1
      %p242 = por %p240, %p241
      %p243 = scmp.ne.s32.totalorder %s232, %s233
      %p244 = scmp.eq.s32.totalorder %s30, 0
      %p245 = por %p243, %p244
      %p246 = scmp.ne.s32.totalorder %s232, %s233
      %p247 = scmp.eq.s32.totalorder %s31, 1
      %p248 = por %p246, %p247
      %p250 = scmp.ne.s32.totalorder %s233, %s249
      %p251 = scmp.eq.s32.totalorder %s31, 0
      %p252 = por %p250, %p251
      %p253 = scmp.le.s32.totalorder 1, %s25
      %p254 = scmp.lt.s32.totalorder %s25, 3
      %p255 = pnand %p253, %p254
      %p256 = pneg %p255
      // Predicated region
      $region9: #{tpu_custom_call.1} parent=5 // pred_check
        _
      $region10: #{tpu_custom_call.1} parent=5 // pred_check_branch
        %258 = sbr.rel (%p255) target = $region12
      $region11: #{tpu_custom_call.1} parent=5 // pred_region
        %s259 = ssub.s32 %s25, 1
        // Predicated region
        $region13: #{tpu_custom_call.1} parent=11 // pred_check
          %p260 = pneg %p72
        $region14: #{tpu_custom_call.1} parent=11 // pred_check_branch
          %262 = sbr.rel (%p260) target = $region16
        $region15: #{tpu_custom_call.1} parent=11 // pred_region
          %s264 = ssub.s32 256, 256
          %265 = vsyncadd [#allocation6], %s264
          %s266 = sshll.u32 [#allocation5], 4
          %s267 = int_to_ptr.vmem [resolvable:$true] %s266
          %272 = dma.hbm_to_vmem [thread:$0]  %s1, 256, %s267, [#allocation6], 64, 64, 4
        $region16: #{tpu_custom_call.1} parent=11 // pred_fallthru
          _
        // Predicated region
        $region17: #{tpu_custom_call.1} parent=11 // pred_check
          %p273 = pneg %p93
        $region18: #{tpu_custom_call.1} parent=11 // pred_check_branch
          %275 = sbr.rel (%p273) target = $region20
        $region19: #{tpu_custom_call.1} parent=11 // pred_region
          %s277 = ssub.s32 16, 16
          %278 = vsyncadd [#allocation6], %s277
          %s280 = sshll.u32 [#allocation7], 4
          %s281 = int_to_ptr.vmem [resolvable:$true] %s280
          %283 = dma.hbm_to_vmem [thread:$0]  %s2, 16, %s281, [#allocation6]
        $region20: #{tpu_custom_call.1} parent=11 // pred_fallthru
          _
        // Predicated region
        $region21: #{tpu_custom_call.1} parent=11 // pred_check
          %p284 = pneg %p114
        $region22: #{tpu_custom_call.1} parent=11 // pred_check_branch
          %286 = sbr.rel (%p284) target = $region24
        $region23: #{tpu_custom_call.1} parent=11 // pred_region
          %s288 = ssub.s32 256, 256
          %289 = vsyncadd [#allocation9], %s288
          %s290 = sshll.u32 [#allocation8], 4
          %s291 = int_to_ptr.vmem [resolvable:$true] %s290
          %296 = dma.hbm_to_vmem [thread:$0]  %s3, 256, %s291, [#allocation9], 64, 64, 4
        $region24: #{tpu_custom_call.1} parent=11 // pred_fallthru
          _
        // Predicated region
        $region25: #{tpu_custom_call.1} parent=11 // pred_check
          %p297 = pneg %p135
        $region26: #{tpu_custom_call.1} parent=11 // pred_check_branch
          %299 = sbr.rel (%p297) target = $region28
        $region27: #{tpu_custom_call.1} parent=11 // pred_region
          %s301 = ssub.s32 16, 16
          %302 = vsyncadd [#allocation9], %s301
          %s304 = sshll.u32 [#allocation10], 4
          %s305 = int_to_ptr.vmem [resolvable:$true] %s304
          %307 = dma.hbm_to_vmem [thread:$0]  %s4, 16, %s305, [#allocation9]
        $region28: #{tpu_custom_call.1} parent=11 // pred_fallthru
          _
        // Predicated region
        $region29: #{tpu_custom_call.1} parent=11 // pred_check
          %p308 = pneg %p156
        $region30: #{tpu_custom_call.1} parent=11 // pred_check_branch
          %310 = sbr.rel (%p308) target = $region32
        $region31: #{tpu_custom_call.1} parent=11 // pred_region
          %s312 = ssub.s32 256, 256
          %313 = vsyncadd [#allocation12], %s312
          %s314 = sshll.u32 [#allocation11], 4
          %s315 = int_to_ptr.vmem [resolvable:$true] %s314
          %320 = dma.hbm_to_vmem [thread:$0]  %s5, 256, %s315, [#allocation12], 64, 64, 4
        $region32: #{tpu_custom_call.1} parent=11 // pred_fallthru
          _
        // Predicated region
        $region33: #{tpu_custom_call.1} parent=11 // pred_check
          %p321 = pneg %p177
        $region34: #{tpu_custom_call.1} parent=11 // pred_check_branch
          %323 = sbr.rel (%p321) target = $region36
        $region35: #{tpu_custom_call.1} parent=11 // pred_region
          %s325 = ssub.s32 16, 16
          %326 = vsyncadd [#allocation12], %s325
          %s328 = sshll.u32 [#allocation13], 4
          %s329 = int_to_ptr.vmem [resolvable:$true] %s328
          %331 = dma.hbm_to_vmem [thread:$0]  %s6, 16, %s329, [#allocation12]
        $region36: #{tpu_custom_call.1} parent=11 // pred_fallthru
          _
        // Predicated region
        $region37: #{tpu_custom_call.1} parent=11 // pred_check
          %p332 = pneg %p198
        $region38: #{tpu_custom_call.1} parent=11 // pred_check_branch
          %334 = sbr.rel (%p332) target = $region40
        $region39: #{tpu_custom_call.1} parent=11 // pred_region
          %s336 = ssub.s32 128, 128
          %337 = vsyncadd [#allocation15], %s336
          %s338 = sshll.u32 [#allocation14], 4
          %s339 = int_to_ptr.vmem [resolvable:$true] %s338
          %344 = dma.hbm_to_vmem [thread:$0]  %s7, 128, %s339, [#allocation15], 64, 64, 4
        $region40: #{tpu_custom_call.1} parent=11 // pred_fallthru
          _
        // Predicated region
        $region41: #{tpu_custom_call.1} parent=11 // pred_check
          %p345 = pneg %p219
        $region42: #{tpu_custom_call.1} parent=11 // pred_check_branch
          %347 = sbr.rel (%p345) target = $region44
        $region43: #{tpu_custom_call.1} parent=11 // pred_region
          %s349 = ssub.s32 16, 16
          %350 = vsyncadd [#allocation15], %s349
          %s352 = sshll.u32 [#allocation16], 4
          %s353 = int_to_ptr.vmem [resolvable:$true] %s352
          %355 = dma.hbm_to_vmem [thread:$0]  %s8, 16, %s353, [#allocation15]
        $region44: #{tpu_custom_call.1} parent=11 // pred_fallthru
          _
      $region12: #{tpu_custom_call.1} parent=5 // pred_fallthru
        _
      %p356 = scmp.lt.s32.totalorder %s25, 2
      // Predicated region
      $region45: #{tpu_custom_call.1} parent=5 // pred_check
        %p357 = pneg %p356
      $region46: #{tpu_custom_call.1} parent=5 // pred_check_branch
        %359 = sbr.rel (%p357) target = $region48
      $region47: #{tpu_custom_call.1} parent=5 // pred_region
        // Predicated region
        $region49: #{tpu_custom_call.1} parent=47 // pred_check
          %p360 = pneg %p45
        $region50: #{tpu_custom_call.1} parent=47 // pred_check_branch
          %362 = sbr.rel (%p360) target = $region52
        $region51: #{tpu_custom_call.1} parent=47 // pred_region
          %s363 = sand.u32 %s35, 1
          %s364 = scalar_lea.sflag [#allocation3], %s363
          %s365 = sand.u32 %s35, 1
          %s366 = smul.addr %s365, 4
          %s367 = scalar_lea.vmem [#allocation2], %s366
          %s369 = ssub.s32 64, 64
          %370 = vsyncadd %s364, %s369
          %s371 = smul.addr %s25, 64
          %s372 = scalar_lea.hbm %s0, %s371
          %s374 = sshll.u32 %s367, 4
          %s375 = int_to_ptr.vmem [resolvable:$true] %s374
          %377 = dma.hbm_to_vmem [thread:$0]  %s372, 64, %s375, %s364
        $region52: #{tpu_custom_call.1} parent=47 // pred_fallthru
          _
      $region48: #{tpu_custom_call.1} parent=5 // pred_fallthru
        _
      %p378 = scmp.le.s32.totalorder 1, %s25
      %p379 = scmp.lt.s32.totalorder %s25, 3
      %p380 = pnand %p378, %p379
      %p381 = pneg %p380
      // Predicated region
      $region53: #{tpu_custom_call.1} parent=5 // pred_check
        _
      $region54: #{tpu_custom_call.1} parent=5 // pred_check_branch
        %383 = sbr.rel (%p380) target = $region56
      $region55: #{tpu_custom_call.1} parent=5 // pred_region
        %s384 = ssub.s32 %s25, 1
        %s385 = sand.u32 %s38, 1
        %s386 = scalar_lea.sflag [#allocation3], %s385
        %s387 = sand.u32 %s38, 1
        %s388 = smul.addr %s387, 4
        %s389 = scalar_lea.vmem [#allocation2], %s388
        // Predicated region
        $region57: #{tpu_custom_call.1} parent=55 // pred_check
          %p390 = pneg %p51
        $region58: #{tpu_custom_call.1} parent=55 // pred_check_branch
          %392 = sbr.rel (%p390) target = $region60
        $region59: #{tpu_custom_call.1} parent=55 // pred_region
          %393 = dma.done %s386, 64
        $region60: #{tpu_custom_call.1} parent=55 // pred_fallthru
          _
        // Predicated region
        $region61: #{tpu_custom_call.1} parent=55 // pred_check
          %p394 = pneg %p72
        $region62: #{tpu_custom_call.1} parent=55 // pred_check_branch
          %396 = sbr.rel (%p394) target = $region64
        $region63: #{tpu_custom_call.1} parent=55 // pred_region
          %397 = dma.done [#allocation6], 256
        $region64: #{tpu_custom_call.1} parent=55 // pred_fallthru
          _
        // Predicated region
        $region65: #{tpu_custom_call.1} parent=55 // pred_check
          %p398 = pneg %p93
        $region66: #{tpu_custom_call.1} parent=55 // pred_check_branch
          %400 = sbr.rel (%p398) target = $region68
        $region67: #{tpu_custom_call.1} parent=55 // pred_region
          %401 = dma.done [#allocation6], 16
        $region68: #{tpu_custom_call.1} parent=55 // pred_fallthru
          _
        // Predicated region
        $region69: #{tpu_custom_call.1} parent=55 // pred_check
          %p402 = pneg %p114
        $region70: #{tpu_custom_call.1} parent=55 // pred_check_branch
          %404 = sbr.rel (%p402) target = $region72
        $region71: #{tpu_custom_call.1} parent=55 // pred_region
          %405 = dma.done [#allocation9], 256
        $region72: #{tpu_custom_call.1} parent=55 // pred_fallthru
          _
        // Predicated region
        $region73: #{tpu_custom_call.1} parent=55 // pred_check
          %p406 = pneg %p135
        $region74: #{tpu_custom_call.1} parent=55 // pred_check_branch
          %408 = sbr.rel (%p406) target = $region76
        $region75: #{tpu_custom_call.1} parent=55 // pred_region
          %409 = dma.done [#allocation9], 16
        $region76: #{tpu_custom_call.1} parent=55 // pred_fallthru
          _
        // Predicated region
        $region77: #{tpu_custom_call.1} parent=55 // pred_check
          %p410 = pneg %p156
        $region78: #{tpu_custom_call.1} parent=55 // pred_check_branch
          %412 = sbr.rel (%p410) target = $region80
        $region79: #{tpu_custom_call.1} parent=55 // pred_region
          %413 = dma.done [#allocation12], 256
        $region80: #{tpu_custom_call.1} parent=55 // pred_fallthru
          _
        // Predicated region
        $region81: #{tpu_custom_call.1} parent=55 // pred_check
          %p414 = pneg %p177
        $region82: #{tpu_custom_call.1} parent=55 // pred_check_branch
          %416 = sbr.rel (%p414) target = $region84
        $region83: #{tpu_custom_call.1} parent=55 // pred_region
          %417 = dma.done [#allocation12], 16
        $region84: #{tpu_custom_call.1} parent=55 // pred_fallthru
          _
        // Predicated region
        $region85: #{tpu_custom_call.1} parent=55 // pred_check
          %p418 = pneg %p198
        $region86: #{tpu_custom_call.1} parent=55 // pred_check_branch
          %420 = sbr.rel (%p418) target = $region88
        $region87: #{tpu_custom_call.1} parent=55 // pred_region
          %421 = dma.done [#allocation15], 128
        $region88: #{tpu_custom_call.1} parent=55 // pred_fallthru
          _
        // Predicated region
        $region89: #{tpu_custom_call.1} parent=55 // pred_check
          %p422 = pneg %p219
        $region90: #{tpu_custom_call.1} parent=55 // pred_check_branch
          %424 = sbr.rel (%p422) target = $region92
        $region91: #{tpu_custom_call.1} parent=55 // pred_region
          %425 = dma.done [#allocation15], 16
        $region92: #{tpu_custom_call.1} parent=55 // pred_fallthru
          _
        %s426 = sand.u32 %s38, 1
        %s427 = scalar_lea.sflag [#allocation3], %s426
        %s428 = sand.u32 %s38, 1
        %s429 = smul.addr %s428, 4
        %s430 = scalar_lea.vmem [#allocation2], %s429
        %p431 = pneg %p51
        %p432 = pneg %p48
        %p433 = pneg %p72
        %p434 = pneg %p69
        %p435 = pneg %p93
        %p436 = pneg %p90
        %p437 = pneg %p114
        %p438 = pneg %p111
        %p439 = pneg %p135
        %p440 = pneg %p132
        %p441 = pneg %p156
        %p442 = pneg %p153
        %p443 = pneg %p177
        %p444 = pneg %p174
        %p445 = pneg %p198
        %p446 = pneg %p195
        %p447 = pneg %p219
        %p448 = pneg %p216
        %p449 = pneg %p245
        %p450 = pneg %p242
        %s451 = sand.u32 %s232, 1
        %s452 = scalar_lea.sflag [#allocation4], %s451
        %s453 = sand.u32 %s232, 1
        %s454 = smul.addr %s453, 8
        %s455 = scalar_lea.vmem [#allocation17], %s454
        %v457 = vld [vmem:[%s389] sm:$0xf]
        %v458 = vld [vmem:[#allocation5] sm:$0xf]
        %v459 = vld [vmem:[#allocation5 + $0x4] sm:$0xf]
        %v460 = vld [vmem:[#allocation5 + $0x8] sm:$0xf]
        %v461 = vld [vmem:[#allocation5 + $0xc] sm:$0xf]
        %v462 = vld [vmem:[#allocation7] sm:$0x1]
        %v464 = vlaneseq
        %v465 = vshrl.u32 %v464, 7
        %v466 = vsub.s32 0, %v465
        %v467 = vrot.slane %v462, %v466
        %v473 = vunpack.c.l.b16 %v458
        %v474 = vunpack.c.l.b16 %v459
        %v475 = vunpack.c.l.b16 %v460
        %v476 = vunpack.c.l.b16 %v461
        %v477 = vpack.c.b16 %v474, %v473
        %v478 = vpack.c.b16 %v476, %v475
        %vm481 = vcmask 261120
        %v483 = vsel %vm481, %v457, 0
        %485 = vmatprep.subr.bf16.mxu0 0
        %486 = vmatpush1.bf16.msra.mxu0 %v477
        %487 = vmatprep.subr.bf16.mxu0 0
        %488 = vmatpush1.bf16.msra.mxu0 %v478
        %489 = vmatprep.subr.bf16.mxu0 0
        %490 = vmatpush1.bf16.msra.mxu0 0
        %491 = vmatprep.subr.bf16.mxu0 0
        %492 = vmatpush1.bf16.msra.mxu0 0
        %493 = vmatprep.subr.bf16.mxu0 0
        %494 = vmatpush1.bf16.msra.mxu0 0
        %495 = vmatprep.subr.bf16.mxu0 0
        %496 = vmatpush1.bf16.msra.mxu0 0
        %497 = vmatprep.subr.bf16.mxu0 0
        %498 = vmatpush1.bf16.msra.mxu0 0
        %499 = vmatprep.subr.bf16.mxu0 0
        %500 = vmatpush1.bf16.msra.mxu0 0
        %501 = vmatprep.subr.bf16.mxu0 0
        %502 = vmatpush1.bf16.msra.mxu0 0
        %503 = vmatprep.subr.bf16.mxu0 0
        %504 = vmatpush1.bf16.msra.mxu0 0
        %505 = vmatprep.subr.bf16.mxu0 0
        %506 = vmatpush1.bf16.msra.mxu0 0
        %507 = vmatprep.subr.bf16.mxu0 0
        %508 = vmatpush1.bf16.msra.mxu0 0
        %509 = vmatprep.subr.bf16.mxu0 0
        %510 = vmatpush1.bf16.msra.mxu0 0
        %511 = vmatprep.subr.bf16.mxu0 0
        %512 = vmatpush1.bf16.msra.mxu0 0
        %513 = vmatprep.subr.bf16.mxu0 0
        %514 = vmatpush1.bf16.msra.mxu0 0
        %515 = vmatprep.subr.bf16.mxu0 0
        %516 = vmatpush1.bf16.msra.mxu0 0
        %517 = vmatprep.mubr.bf16.mxu0 0
        %518 = vmatmul.mubr.bf16.gmra.mrb[0].mxu0 %v483
        %v519 = vpop.f32.mrb[0].mxu0
        %v520 = vadd.f32 %v467, %v519
        %v521 = vpop.f32.mrb[0].mxu0
        %v522 = vpop.f32.mrb[0].mxu0
        %v523 = vpop.f32.mrb[0].mxu0
        %524 = vdwg.mxu0
        %v525 = vld [vmem:[#allocation8] sm:$0xf]
        %v526 = vld [vmem:[#allocation8 + $0x4] sm:$0xf]
        %v527 = vld [vmem:[#allocation8 + $0x8] sm:$0xf]
        %v528 = vld [vmem:[#allocation8 + $0xc] sm:$0xf]
        %v529 = vld [vmem:[#allocation10] sm:$0x1]
        %v531 = vlaneseq
        %v532 = vshrl.u32 %v531, 7
        %v533 = vsub.s32 0, %v532
        %v534 = vrot.slane %v529, %v533
        %v540 = vunpack.c.l.b16 %v525
        %v541 = vunpack.c.l.b16 %v526
        %v542 = vunpack.c.l.b16 %v527
        %v543 = vunpack.c.l.b16 %v528
        %v544 = vpack.c.b16 %v541, %v540
        %v545 = vpack.c.b16 %v543, %v542
        %548 = vmatprep.subr.bf16.mxu0 0
        %549 = vmatpush1.bf16.msra.mxu0 %v544
        %550 = vmatprep.subr.bf16.mxu0 0
        %551 = vmatpush1.bf16.msra.mxu0 %v545
        %552 = vmatprep.subr.bf16.mxu0 0
        %553 = vmatpush1.bf16.msra.mxu0 0
        %554 = vmatprep.subr.bf16.mxu0 0
        %555 = vmatpush1.bf16.msra.mxu0 0
        %556 = vmatprep.subr.bf16.mxu0 0
        %557 = vmatpush1.bf16.msra.mxu0 0
        %558 = vmatprep.subr.bf16.mxu0 0
        %559 = vmatpush1.bf16.msra.mxu0 0
        %560 = vmatprep.subr.bf16.mxu0 0
        %561 = vmatpush1.bf16.msra.mxu0 0
        %562 = vmatprep.subr.bf16.mxu0 0
        %563 = vmatpush1.bf16.msra.mxu0 0
        %564 = vmatprep.subr.bf16.mxu0 0
        %565 = vmatpush1.bf16.msra.mxu0 0
        %566 = vmatprep.subr.bf16.mxu0 0
        %567 = vmatpush1.bf16.msra.mxu0 0
        %568 = vmatprep.subr.bf16.mxu0 0
        %569 = vmatpush1.bf16.msra.mxu0 0
        %570 = vmatprep.subr.bf16.mxu0 0
        %571 = vmatpush1.bf16.msra.mxu0 0
        %572 = vmatprep.subr.bf16.mxu0 0
        %573 = vmatpush1.bf16.msra.mxu0 0
        %574 = vmatprep.subr.bf16.mxu0 0
        %575 = vmatpush1.bf16.msra.mxu0 0
        %576 = vmatprep.subr.bf16.mxu0 0
        %577 = vmatpush1.bf16.msra.mxu0 0
        %578 = vmatprep.subr.bf16.mxu0 0
        %579 = vmatpush1.bf16.msra.mxu0 0
        %580 = vmatprep.mubr.bf16.mxu0 0
        %581 = vmatmul.mubr.bf16.gmra.mrb[0].mxu0 %v483
        %v582 = vpop.f32.mrb[0].mxu0
        %v583 = vadd.f32 %v534, %v582
        %v584 = vpop.f32.mrb[0].mxu0
        %v585 = vpop.f32.mrb[0].mxu0
        %v586 = vpop.f32.mrb[0].mxu0
        %587 = vdwg.mxu0
        %v588 = vld [vmem:[#allocation11] sm:$0xf]
        %v589 = vld [vmem:[#allocation11 + $0x4] sm:$0xf]
        %v590 = vld [vmem:[#allocation11 + $0x8] sm:$0xf]
        %v591 = vld [vmem:[#allocation11 + $0xc] sm:$0xf]
        %v592 = vld [vmem:[#allocation13] sm:$0x1]
        %v594 = vlaneseq
        %v595 = vshrl.u32 %v594, 7
        %v596 = vsub.s32 0, %v595
        %v597 = vrot.slane %v592, %v596
        %v603 = vunpack.c.l.b16 %v588
        %v604 = vunpack.c.l.b16 %v589
        %v605 = vunpack.c.l.b16 %v590
        %v606 = vunpack.c.l.b16 %v591
        %v607 = vpack.c.b16 %v604, %v603
        %v608 = vpack.c.b16 %v606, %v605
        %611 = vmatprep.subr.bf16.mxu0 0
        %612 = vmatpush1.bf16.msra.mxu0 %v607
        %613 = vmatprep.subr.bf16.mxu0 0
        %614 = vmatpush1.bf16.msra.mxu0 %v608
        %615 = vmatprep.subr.bf16.mxu0 0
        %616 = vmatpush1.bf16.msra.mxu0 0
        %617 = vmatprep.subr.bf16.mxu0 0
        %618 = vmatpush1.bf16.msra.mxu0 0
        %619 = vmatprep.subr.bf16.mxu0 0
        %620 = vmatpush1.bf16.msra.mxu0 0
        %621 = vmatprep.subr.bf16.mxu0 0
        %622 = vmatpush1.bf16.msra.mxu0 0
        %623 = vmatprep.subr.bf16.mxu0 0
        %624 = vmatpush1.bf16.msra.mxu0 0
        %625 = vmatprep.subr.bf16.mxu0 0
        %626 = vmatpush1.bf16.msra.mxu0 0
        %627 = vmatprep.subr.bf16.mxu0 0
        %628 = vmatpush1.bf16.msra.mxu0 0
        %629 = vmatprep.subr.bf16.mxu0 0
        %630 = vmatpush1.bf16.msra.mxu0 0
        %631 = vmatprep.subr.bf16.mxu0 0
        %632 = vmatpush1.bf16.msra.mxu0 0
        %633 = vmatprep.subr.bf16.mxu0 0
        %634 = vmatpush1.bf16.msra.mxu0 0
        %635 = vmatprep.subr.bf16.mxu0 0
        %636 = vmatpush1.bf16.msra.mxu0 0
        %637 = vmatprep.subr.bf16.mxu0 0
        %638 = vmatpush1.bf16.msra.mxu0 0
        %639 = vmatprep.subr.bf16.mxu0 0
        %640 = vmatpush1.bf16.msra.mxu0 0
        %641 = vmatprep.subr.bf16.mxu0 0
        %642 = vmatpush1.bf16.msra.mxu0 0
        %643 = vmatprep.mubr.bf16.mxu0 0
        %644 = vmatmul.mubr.bf16.gmra.mrb[0].mxu0 %v483
        %v645 = vpop.f32.mrb[0].mxu0
        %v646 = vadd.f32 %v597, %v645
        %v647 = vpop.f32.mrb[0].mxu0
        %v648 = vpop.f32.mrb[0].mxu0
        %v649 = vpop.f32.mrb[0].mxu0
        %650 = vdwg.mxu0
        %v651 = vpack.c.bf16 %v646, %v646
        %v652 = vld [vmem:[#allocation14] sm:$0xf]
        %v653 = vld [vmem:[#allocation14 + $0x4] sm:$0xf]
        %v654 = vld [vmem:[#allocation16] sm:$0x1]
        %v656 = vlaneseq
        %v657 = vshrl.u32 %v656, 7
        %v658 = vsub.s32 0, %v657
        %v659 = vrot.slane %v654, %v658
        %v663 = vunpack.c.l.b16 %v652
        %v664 = vunpack.c.l.b16 %v653
        %v665 = vpack.c.b16 %v664, %v663
        %vm667 = vcmask 130048
        %v669 = vsel %vm667, %v651, 0
        %671 = vmatprep.subr.bf16.mxu0 0
        %672 = vmatpush1.bf16.msra.mxu0 %v665
        %673 = vmatprep.subr.bf16.mxu0 0
        %674 = vmatpush1.bf16.msra.mxu0 0
        %675 = vmatprep.subr.bf16.mxu0 0
        %676 = vmatpush1.bf16.msra.mxu0 0
        %677 = vmatprep.subr.bf16.mxu0 0
        %678 = vmatpush1.bf16.msra.mxu0 0
        %679 = vmatprep.subr.bf16.mxu0 0
        %680 = vmatpush1.bf16.msra.mxu0 0
        %681 = vmatprep.subr.bf16.mxu0 0
        %682 = vmatpush1.bf16.msra.mxu0 0
        %683 = vmatprep.subr.bf16.mxu0 0
        %684 = vmatpush1.bf16.msra.mxu0 0
        %685 = vmatprep.subr.bf16.mxu0 0
        %686 = vmatpush1.bf16.msra.mxu0 0
        %687 = vmatprep.subr.bf16.mxu0 0
        %688 = vmatpush1.bf16.msra.mxu0 0
        %689 = vmatprep.subr.bf16.mxu0 0
        %690 = vmatpush1.bf16.msra.mxu0 0
        %691 = vmatprep.subr.bf16.mxu0 0
        %692 = vmatpush1.bf16.msra.mxu0 0
        %693 = vmatprep.subr.bf16.mxu0 0
        %694 = vmatpush1.bf16.msra.mxu0 0
        %695 = vmatprep.subr.bf16.mxu0 0
        %696 = vmatpush1.bf16.msra.mxu0 0
        %697 = vmatprep.subr.bf16.mxu0 0
        %698 = vmatpush1.bf16.msra.mxu0 0
        %699 = vmatprep.subr.bf16.mxu0 0
        %700 = vmatpush1.bf16.msra.mxu0 0
        %701 = vmatprep.subr.bf16.mxu0 0
        %702 = vmatpush1.bf16.msra.mxu0 0
        %703 = vmatprep.mubr.bf16.mxu0 0
        %704 = vmatmul.mubr.bf16.gmra.mrb[0].mxu0 %v669
        %v705 = vpop.f32.mrb[0].mxu0
        %v706 = vadd.f32 %v659, %v705
        %v707 = vpop.f32.mrb[0].mxu0
        %v708 = vpop.f32.mrb[0].mxu0
        %v709 = vpop.f32.mrb[0].mxu0
        %710 = vdwg.mxu0
        %712 = vrot.lane.b32.xlu0 %v520, 120
        %v713 = vpop.permute.xlu0 %712
        %715 = vrot.lane.b32.xlu0 %v520, 112
        %v716 = vpop.permute.xlu0 %715
        %718 = vrot.lane.b32.xlu0 %v520, 104
        %v719 = vpop.permute.xlu0 %718
        %v721 = vpack.c.bf16 %v520, %v520
        %v722 = vpack.c.bf16 %v713, %v713
        %v723 = vpack.c.bf16 %v716, %v716
        %v724 = vpack.c.bf16 %v719, %v719
        %726 = vrot.lane.b32.xlu0 %v583, 120
        %v727 = vpop.permute.xlu0 %726
        %729 = vrot.lane.b32.xlu0 %v583, 112
        %v730 = vpop.permute.xlu0 %729
        %732 = vrot.lane.b32.xlu0 %v583, 104
        %v733 = vpop.permute.xlu0 %732
        %v735 = vpack.c.bf16 %v583, %v583
        %v736 = vpack.c.bf16 %v727, %v727
        %v737 = vpack.c.bf16 %v730, %v730
        %v738 = vpack.c.bf16 %v733, %v733
        %740 = vrot.lane.b32.xlu0 %v706, 120
        %v741 = vpop.permute.xlu0 %740
        %743 = vrot.lane.b32.xlu0 %v706, 112
        %v744 = vpop.permute.xlu0 %743
        %746 = vrot.lane.b32.xlu0 %v706, 104
        %v747 = vpop.permute.xlu0 %746
        %v749 = vpack.c.bf16 %v706, %v706
        %v750 = vpack.c.bf16 %v741, %v741
        %v751 = vpack.c.bf16 %v744, %v744
        %v752 = vpack.c.bf16 %v747, %v747
        %vm753 = vcmask 64512
        %v755 = vsel %vm753, %v721, 0
        %v758 = vsel %vm753, %v735, 0
        %760 = vmatprep.subr.bf16.mxu0 0
        %761 = vmatpush1.bf16.xpose.msra.mxu0 %v758
        %762 = vmatprep.subr.bf16.mxu0 0
        %763 = vmatpush1.bf16.xpose.msra.mxu0 0
        %764 = vmatprep.subr.bf16.mxu0 0
        %765 = vmatpush1.bf16.xpose.msra.mxu0 0
        %766 = vmatprep.subr.bf16.mxu0 0
        %767 = vmatpush1.bf16.xpose.msra.mxu0 0
        %768 = vmatprep.subr.bf16.mxu0 0
        %769 = vmatpush1.bf16.xpose.msra.mxu0 0
        %770 = vmatprep.subr.bf16.mxu0 0
        %771 = vmatpush1.bf16.xpose.msra.mxu0 0
        %772 = vmatprep.subr.bf16.mxu0 0
        %773 = vmatpush1.bf16.xpose.msra.mxu0 0
        %774 = vmatprep.subr.bf16.mxu0 0
        %775 = vmatpush1.bf16.xpose.msra.mxu0 0
        %776 = vmatprep.subr.bf16.mxu0 0
        %777 = vmatpush1.bf16.xpose.msra.mxu0 0
        %778 = vmatprep.subr.bf16.mxu0 0
        %779 = vmatpush1.bf16.xpose.msra.mxu0 0
        %780 = vmatprep.subr.bf16.mxu0 0
        %781 = vmatpush1.bf16.xpose.msra.mxu0 0
        %782 = vmatprep.subr.bf16.mxu0 0
        %783 = vmatpush1.bf16.xpose.msra.mxu0 0
        %784 = vmatprep.subr.bf16.mxu0 0
        %785 = vmatpush1.bf16.xpose.msra.mxu0 0
        %786 = vmatprep.subr.bf16.mxu0 0
        %787 = vmatpush1.bf16.xpose.msra.mxu0 0
        %788 = vmatprep.subr.bf16.mxu0 0
        %789 = vmatpush1.bf16.xpose.msra.mxu0 0
        %790 = vmatprep.subr.bf16.mxu0 0
        %791 = vmatpush1.bf16.xpose.msra.mxu0 0
        %792 = vmatprep.mubr.bf16.mxu0 0
        %793 = vmatmul.mubr.bf16.gmra.mrb[0].mxu0 %v755
        %v794 = vpop.f32.mrb[0].mxu0
        %v795 = vadd.f32 0.0, %v794
        %v796 = vpop.f32.mrb[0].mxu0
        %v797 = vpop.f32.mrb[0].mxu0
        %v798 = vpop.f32.mrb[0].mxu0
        %799 = vdwg.mxu0
        %v801 = vsel %vm753, %v722, 0
        %v804 = vsel %vm753, %v736, 0
        %806 = vmatprep.subr.bf16.mxu0 0
        %807 = vmatpush1.bf16.xpose.msra.mxu0 %v804
        %808 = vmatprep.subr.bf16.mxu0 0
        %809 = vmatpush1.bf16.xpose.msra.mxu0 0
        %810 = vmatprep.subr.bf16.mxu0 0
        %811 = vmatpush1.bf16.xpose.msra.mxu0 0
        %812 = vmatprep.subr.bf16.mxu0 0
        %813 = vmatpush1.bf16.xpose.msra.mxu0 0
        %814 = vmatprep.subr.bf16.mxu0 0
        %815 = vmatpush1.bf16.xpose.msra.mxu0 0
        %816 = vmatprep.subr.bf16.mxu0 0
        %817 = vmatpush1.bf16.xpose.msra.mxu0 0
        %818 = vmatprep.subr.bf16.mxu0 0
        %819 = vmatpush1.bf16.xpose.msra.mxu0 0
        %820 = vmatprep.subr.bf16.mxu0 0
        %821 = vmatpush1.bf16.xpose.msra.mxu0 0
        %822 = vmatprep.subr.bf16.mxu0 0
        %823 = vmatpush1.bf16.xpose.msra.mxu0 0
        %824 = vmatprep.subr.bf16.mxu0 0
        %825 = vmatpush1.bf16.xpose.msra.mxu0 0
        %826 = vmatprep.subr.bf16.mxu0 0
        %827 = vmatpush1.bf16.xpose.msra.mxu0 0
        %828 = vmatprep.subr.bf16.mxu0 0
        %829 = vmatpush1.bf16.xpose.msra.mxu0 0
        %830 = vmatprep.subr.bf16.mxu0 0
        %831 = vmatpush1.bf16.xpose.msra.mxu0 0
        %832 = vmatprep.subr.bf16.mxu0 0
        %833 = vmatpush1.bf16.xpose.msra.mxu0 0
        %834 = vmatprep.subr.bf16.mxu0 0
        %835 = vmatpush1.bf16.xpose.msra.mxu0 0
        %836 = vmatprep.subr.bf16.mxu0 0
        %837 = vmatpush1.bf16.xpose.msra.mxu0 0
        %838 = vmatprep.mubr.bf16.mxu0 0
        %839 = vmatmul.mubr.bf16.gmra.mrb[0].mxu0 %v801
        %v840 = vpop.f32.mrb[0].mxu0
        %v841 = vadd.f32 0.0, %v840
        %v842 = vpop.f32.mrb[0].mxu0
        %v843 = vpop.f32.mrb[0].mxu0
        %v844 = vpop.f32.mrb[0].mxu0
        %845 = vdwg.mxu0
        %v847 = vsel %vm753, %v723, 0
        %v850 = vsel %vm753, %v737, 0
        %852 = vmatprep.subr.bf16.mxu0 0
        %853 = vmatpush1.bf16.xpose.msra.mxu0 %v850
        %854 = vmatprep.subr.bf16.mxu0 0
        %855 = vmatpush1.bf16.xpose.msra.mxu0 0
        %856 = vmatprep.subr.bf16.mxu0 0
        %857 = vmatpush1.bf16.xpose.msra.mxu0 0
        %858 = vmatprep.subr.bf16.mxu0 0
        %859 = vmatpush1.bf16.xpose.msra.mxu0 0
        %860 = vmatprep.subr.bf16.mxu0 0
        %861 = vmatpush1.bf16.xpose.msra.mxu0 0
        %862 = vmatprep.subr.bf16.mxu0 0
        %863 = vmatpush1.bf16.xpose.msra.mxu0 0
        %864 = vmatprep.subr.bf16.mxu0 0
        %865 = vmatpush1.bf16.xpose.msra.mxu0 0
        %866 = vmatprep.subr.bf16.mxu0 0
        %867 = vmatpush1.bf16.xpose.msra.mxu0 0
        %868 = vmatprep.subr.bf16.mxu0 0
        %869 = vmatpush1.bf16.xpose.msra.mxu0 0
        %870 = vmatprep.subr.bf16.mxu0 0
        %871 = vmatpush1.bf16.xpose.msra.mxu0 0
        %872 = vmatprep.subr.bf16.mxu0 0
        %873 = vmatpush1.bf16.xpose.msra.mxu0 0
        %874 = vmatprep.subr.bf16.mxu0 0
        %875 = vmatpush1.bf16.xpose.msra.mxu0 0
        %876 = vmatprep.subr.bf16.mxu0 0
        %877 = vmatpush1.bf16.xpose.msra.mxu0 0
        %878 = vmatprep.subr.bf16.mxu0 0
        %879 = vmatpush1.bf16.xpose.msra.mxu0 0
        %880 = vmatprep.subr.bf16.mxu0 0
        %881 = vmatpush1.bf16.xpose.msra.mxu0 0
        %882 = vmatprep.subr.bf16.mxu0 0
        %883 = vmatpush1.bf16.xpose.msra.mxu0 0
        %884 = vmatprep.mubr.bf16.mxu0 0
        %885 = vmatmul.mubr.bf16.gmra.mrb[0].mxu0 %v847
        %v886 = vpop.f32.mrb[0].mxu0
        %v887 = vadd.f32 0.0, %v886
        %v888 = vpop.f32.mrb[0].mxu0
        %v889 = vpop.f32.mrb[0].mxu0
        %v890 = vpop.f32.mrb[0].mxu0
        %891 = vdwg.mxu0
        %v893 = vsel %vm753, %v724, 0
        %v896 = vsel %vm753, %v738, 0
        %898 = vmatprep.subr.bf16.mxu0 0
        %899 = vmatpush1.bf16.xpose.msra.mxu0 %v896
        %900 = vmatprep.subr.bf16.mxu0 0
        %901 = vmatpush1.bf16.xpose.msra.mxu0 0
        %902 = vmatprep.subr.bf16.mxu0 0
        %903 = vmatpush1.bf16.xpose.msra.mxu0 0
        %904 = vmatprep.subr.bf16.mxu0 0
        %905 = vmatpush1.bf16.xpose.msra.mxu0 0
        %906 = vmatprep.subr.bf16.mxu0 0
        %907 = vmatpush1.bf16.xpose.msra.mxu0 0
        %908 = vmatprep.subr.bf16.mxu0 0
        %909 = vmatpush1.bf16.xpose.msra.mxu0 0
        %910 = vmatprep.subr.bf16.mxu0 0
        %911 = vmatpush1.bf16.xpose.msra.mxu0 0
        %912 = vmatprep.subr.bf16.mxu0 0
        %913 = vmatpush1.bf16.xpose.msra.mxu0 0
        %914 = vmatprep.subr.bf16.mxu0 0
        %915 = vmatpush1.bf16.xpose.msra.mxu0 0
        %916 = vmatprep.subr.bf16.mxu0 0
        %917 = vmatpush1.bf16.xpose.msra.mxu0 0
        %918 = vmatprep.subr.bf16.mxu0 0
        %919 = vmatpush1.bf16.xpose.msra.mxu0 0
        %920 = vmatprep.subr.bf16.mxu0 0
        %921 = vmatpush1.bf16.xpose.msra.mxu0 0
        %922 = vmatprep.subr.bf16.mxu0 0
        %923 = vmatpush1.bf16.xpose.msra.mxu0 0
        %924 = vmatprep.subr.bf16.mxu0 0
        %925 = vmatpush1.bf16.xpose.msra.mxu0 0
        %926 = vmatprep.subr.bf16.mxu0 0
        %927 = vmatpush1.bf16.xpose.msra.mxu0 0
        %928 = vmatprep.subr.bf16.mxu0 0
        %929 = vmatpush1.bf16.xpose.msra.mxu0 0
        %930 = vmatprep.mubr.bf16.mxu0 0
        %931 = vmatmul.mubr.bf16.gmra.mrb[0].mxu0 %v893
        %v932 = vpop.f32.mrb[0].mxu0
        %v933 = vadd.f32 0.0, %v932
        %v934 = vpop.f32.mrb[0].mxu0
        %v935 = vpop.f32.mrb[0].mxu0
        %v936 = vpop.f32.mrb[0].mxu0
        %937 = vdwg.mxu0
        %v938 = vlaneseq
        %v939 = vshrl.u32 %v938, 7
        %v940 = vlaneseq
        %v941 = vand.u32 %v940, 127
        %vm942 = vcmp.lt.s32.totalorder %v941, %v939
        %v943 = vsel %vm942, 1, 0
        %vm944 = vcmp.eq.s32.totalorder %v943, 1
        %v945 = vsel %vm944, -1e+30, %v795
        %v946 = vsel %vm944, -1e+30, %v841
        %v947 = vsel %vm944, -1e+30, %v887
        %v948 = vsel %vm944, -1e+30, %v933
        %v949 = vsel %vm753, %v945, -inf
        %950 = vmax.xlane.f32.xlu0 %v949
        %v951 = vpop.xlane.xlu0 %950
        %v952 = vsel %vm753, %v946, -inf
        %953 = vmax.xlane.f32.xlu0 %v952
        %v954 = vpop.xlane.xlu0 %953
        %v955 = vsel %vm753, %v947, -inf
        %956 = vmax.xlane.f32.xlu0 %v955
        %v957 = vpop.xlane.xlu0 %956
        %v958 = vsel %vm753, %v948, -inf
        %959 = vmax.xlane.f32.xlu0 %v958
        %v960 = vpop.xlane.xlu0 %959
        %v961 = vsub.f32 %v945, %v951
        %v962 = vsub.f32 %v946, %v954
        %v963 = vsub.f32 %v947, %v957
        %v964 = vsub.f32 %v948, %v960
        %v965 = vmul.f32 %v961, 1.442695
        %v966 = vpow.pop %v965
        %v967 = vmul.f32 %v962, 1.442695
        %v968 = vpow.pop %v967
        %v969 = vmul.f32 %v963, 1.442695
        %v970 = vpow.pop %v969
        %v971 = vmul.f32 %v964, 1.442695
        %v972 = vpow.pop %v971
        %v973 = vsel %vm753, %v966, 0.0
        %974 = vadd.xlane.f32.xlu0 %v973
        %v975 = vpop.xlane.xlu0 %974
        %v976 = vsel %vm753, %v968, 0.0
        %977 = vadd.xlane.f32.xlu0 %v976
        %v978 = vpop.xlane.xlu0 %977
        %v979 = vsel %vm753, %v970, 0.0
        %980 = vadd.xlane.f32.xlu0 %v979
        %v981 = vpop.xlane.xlu0 %980
        %v982 = vsel %vm753, %v972, 0.0
        %983 = vadd.xlane.f32.xlu0 %v982
        %v984 = vpop.xlane.xlu0 %983
        %v985 = vrcp.pop %v975
        %v986 = vrcp.pop %v978
        %v987 = vrcp.pop %v981
        %v988 = vrcp.pop %v984
        %v989 = vmul.f32 %v966, %v985
        %v990 = vmul.f32 %v968, %v986
        %v991 = vmul.f32 %v970, %v987
        %v992 = vmul.f32 %v972, %v988
        %v993 = vpack.c.bf16 %v989, %v989
        %v994 = vpack.c.bf16 %v990, %v990
        %v995 = vpack.c.bf16 %v991, %v991
        %v996 = vpack.c.bf16 %v992, %v992
        %v998 = vsel %vm753, %v993, 0
        %vm1000 = vcmask 1043456
        %v1002 = vsel %vm1000, %v749, 0
        %1004 = vmatprep.subr.bf16.mxu0 0
        %1005 = vmatpush1.bf16.msra.mxu0 %v1002
        %1006 = vmatprep.subr.bf16.mxu0 0
        %1007 = vmatpush1.bf16.msra.mxu0 0
        %1008 = vmatprep.subr.bf16.mxu0 0
        %1009 = vmatpush1.bf16.msra.mxu0 0
        %1010 = vmatprep.subr.bf16.mxu0 0
        %1011 = vmatpush1.bf16.msra.mxu0 0
        %1012 = vmatprep.subr.bf16.mxu0 0
        %1013 = vmatpush1.bf16.msra.mxu0 0
        %1014 = vmatprep.subr.bf16.mxu0 0
        %1015 = vmatpush1.bf16.msra.mxu0 0
        %1016 = vmatprep.subr.bf16.mxu0 0
        %1017 = vmatpush1.bf16.msra.mxu0 0
        %1018 = vmatprep.subr.bf16.mxu0 0
        %1019 = vmatpush1.bf16.msra.mxu0 0
        %1020 = vmatprep.subr.bf16.mxu0 0
        %1021 = vmatpush1.bf16.msra.mxu0 0
        %1022 = vmatprep.subr.bf16.mxu0 0
        %1023 = vmatpush1.bf16.msra.mxu0 0
        %1024 = vmatprep.subr.bf16.mxu0 0
        %1025 = vmatpush1.bf16.msra.mxu0 0
        %1026 = vmatprep.subr.bf16.mxu0 0
        %1027 = vmatpush1.bf16.msra.mxu0 0
        %1028 = vmatprep.subr.bf16.mxu0 0
        %1029 = vmatpush1.bf16.msra.mxu0 0
        %1030 = vmatprep.subr.bf16.mxu0 0
        %1031 = vmatpush1.bf16.msra.mxu0 0
        %1032 = vmatprep.subr.bf16.mxu0 0
        %1033 = vmatpush1.bf16.msra.mxu0 0
        %1034 = vmatprep.subr.bf16.mxu0 0
        %1035 = vmatpush1.bf16.msra.mxu0 0
        %1036 = vmatprep.mubr.bf16.mxu0 0
        %1037 = vmatmul.mubr.bf16.gmra.mrb[0].mxu0 %v998
        %v1038 = vpop.f32.mrb[0].mxu0
        %v1039 = vadd.f32 0.0, %v1038
        %v1040 = vpop.f32.mrb[0].mxu0
        %v1041 = vpop.f32.mrb[0].mxu0
        %v1042 = vpop.f32.mrb[0].mxu0
        %1043 = vdwg.mxu0
        %v1045 = vsel %vm753, %v994, 0
        %v1048 = vsel %vm1000, %v750, 0
        %1050 = vmatprep.subr.bf16.mxu0 0
        %1051 = vmatpush1.bf16.msra.mxu0 %v1048
        %1052 = vmatprep.subr.bf16.mxu0 0
        %1053 = vmatpush1.bf16.msra.mxu0 0
        %1054 = vmatprep.subr.bf16.mxu0 0
        %1055 = vmatpush1.bf16.msra.mxu0 0
        %1056 = vmatprep.subr.bf16.mxu0 0
        %1057 = vmatpush1.bf16.msra.mxu0 0
        %1058 = vmatprep.subr.bf16.mxu0 0
        %1059 = vmatpush1.bf16.msra.mxu0 0
        %1060 = vmatprep.subr.bf16.mxu0 0
        %1061 = vmatpush1.bf16.msra.mxu0 0
        %1062 = vmatprep.subr.bf16.mxu0 0
        %1063 = vmatpush1.bf16.msra.mxu0 0
        %1064 = vmatprep.subr.bf16.mxu0 0
        %1065 = vmatpush1.bf16.msra.mxu0 0
        %1066 = vmatprep.subr.bf16.mxu0 0
        %1067 = vmatpush1.bf16.msra.mxu0 0
        %1068 = vmatprep.subr.bf16.mxu0 0
        %1069 = vmatpush1.bf16.msra.mxu0 0
        %1070 = vmatprep.subr.bf16.mxu0 0
        %1071 = vmatpush1.bf16.msra.mxu0 0
        %1072 = vmatprep.subr.bf16.mxu0 0
        %1073 = vmatpush1.bf16.msra.mxu0 0
        %1074 = vmatprep.subr.bf16.mxu0 0
        %1075 = vmatpush1.bf16.msra.mxu0 0
        %1076 = vmatprep.subr.bf16.mxu0 0
        %1077 = vmatpush1.bf16.msra.mxu0 0
        %1078 = vmatprep.subr.bf16.mxu0 0
        %1079 = vmatpush1.bf16.msra.mxu0 0
        %1080 = vmatprep.subr.bf16.mxu0 0
        %1081 = vmatpush1.bf16.msra.mxu0 0
        %1082 = vmatprep.mubr.bf16.mxu0 0
        %1083 = vmatmul.mubr.bf16.gmra.mrb[0].mxu0 %v1045
        %v1084 = vpop.f32.mrb[0].mxu0
        %v1085 = vadd.f32 0.0, %v1084
        %v1086 = vpop.f32.mrb[0].mxu0
        %v1087 = vpop.f32.mrb[0].mxu0
        %v1088 = vpop.f32.mrb[0].mxu0
        %1089 = vdwg.mxu0
        %v1091 = vsel %vm753, %v995, 0
        %v1094 = vsel %vm1000, %v751, 0
        %1096 = vmatprep.subr.bf16.mxu0 0
        %1097 = vmatpush1.bf16.msra.mxu0 %v1094
        %1098 = vmatprep.subr.bf16.mxu0 0
        %1099 = vmatpush1.bf16.msra.mxu0 0
        %1100 = vmatprep.subr.bf16.mxu0 0
        %1101 = vmatpush1.bf16.msra.mxu0 0
        %1102 = vmatprep.subr.bf16.mxu0 0
        %1103 = vmatpush1.bf16.msra.mxu0 0
        %1104 = vmatprep.subr.bf16.mxu0 0
        %1105 = vmatpush1.bf16.msra.mxu0 0
        %1106 = vmatprep.subr.bf16.mxu0 0
        %1107 = vmatpush1.bf16.msra.mxu0 0
        %1108 = vmatprep.subr.bf16.mxu0 0
        %1109 = vmatpush1.bf16.msra.mxu0 0
        %1110 = vmatprep.subr.bf16.mxu0 0
        %1111 = vmatpush1.bf16.msra.mxu0 0
        %1112 = vmatprep.subr.bf16.mxu0 0
        %1113 = vmatpush1.bf16.msra.mxu0 0
        %1114 = vmatprep.subr.bf16.mxu0 0
        %1115 = vmatpush1.bf16.msra.mxu0 0
        %1116 = vmatprep.subr.bf16.mxu0 0
        %1117 = vmatpush1.bf16.msra.mxu0 0
        %1118 = vmatprep.subr.bf16.mxu0 0
        %1119 = vmatpush1.bf16.msra.mxu0 0
        %1120 = vmatprep.subr.bf16.mxu0 0
        %1121 = vmatpush1.bf16.msra.mxu0 0
        %1122 = vmatprep.subr.bf16.mxu0 0
        %1123 = vmatpush1.bf16.msra.mxu0 0
        %1124 = vmatprep.subr.bf16.mxu0 0
        %1125 = vmatpush1.bf16.msra.mxu0 0
        %1126 = vmatprep.subr.bf16.mxu0 0
        %1127 = vmatpush1.bf16.msra.mxu0 0
        %1128 = vmatprep.mubr.bf16.mxu0 0
        %1129 = vmatmul.mubr.bf16.gmra.mrb[0].mxu0 %v1091
        %v1130 = vpop.f32.mrb[0].mxu0
        %v1131 = vadd.f32 0.0, %v1130
        %v1132 = vpop.f32.mrb[0].mxu0
        %v1133 = vpop.f32.mrb[0].mxu0
        %v1134 = vpop.f32.mrb[0].mxu0
        %1135 = vdwg.mxu0
        %v1137 = vsel %vm753, %v996, 0
        %v1140 = vsel %vm1000, %v752, 0
        %1142 = vmatprep.subr.bf16.mxu0 0
        %1143 = vmatpush1.bf16.msra.mxu0 %v1140
        %1144 = vmatprep.subr.bf16.mxu0 0
        %1145 = vmatpush1.bf16.msra.mxu0 0
        %1146 = vmatprep.subr.bf16.mxu0 0
        %1147 = vmatpush1.bf16.msra.mxu0 0
        %1148 = vmatprep.subr.bf16.mxu0 0
        %1149 = vmatpush1.bf16.msra.mxu0 0
        %1150 = vmatprep.subr.bf16.mxu0 0
        %1151 = vmatpush1.bf16.msra.mxu0 0
        %1152 = vmatprep.subr.bf16.mxu0 0
        %1153 = vmatpush1.bf16.msra.mxu0 0
        %1154 = vmatprep.subr.bf16.mxu0 0
        %1155 = vmatpush1.bf16.msra.mxu0 0
        %1156 = vmatprep.subr.bf16.mxu0 0
        %1157 = vmatpush1.bf16.msra.mxu0 0
        %1158 = vmatprep.subr.bf16.mxu0 0
        %1159 = vmatpush1.bf16.msra.mxu0 0
        %1160 = vmatprep.subr.bf16.mxu0 0
        %1161 = vmatpush1.bf16.msra.mxu0 0
        %1162 = vmatprep.subr.bf16.mxu0 0
        %1163 = vmatpush1.bf16.msra.mxu0 0
        %1164 = vmatprep.subr.bf16.mxu0 0
        %1165 = vmatpush1.bf16.msra.mxu0 0
        %1166 = vmatprep.subr.bf16.mxu0 0
        %1167 = vmatpush1.bf16.msra.mxu0 0
        %1168 = vmatprep.subr.bf16.mxu0 0
        %1169 = vmatpush1.bf16.msra.mxu0 0
        %1170 = vmatprep.subr.bf16.mxu0 0
        %1171 = vmatpush1.bf16.msra.mxu0 0
        %1172 = vmatprep.subr.bf16.mxu0 0
        %1173 = vmatpush1.bf16.msra.mxu0 0
        %1174 = vmatprep.mubr.bf16.mxu0 0
        %1175 = vmatmul.mubr.bf16.gmra.mrb[0].mxu0 %v1137
        %v1176 = vpop.f32.mrb[0].mxu0
        %v1177 = vadd.f32 0.0, %v1176
        %v1178 = vpop.f32.mrb[0].mxu0
        %v1179 = vpop.f32.mrb[0].mxu0
        %v1180 = vpop.f32.mrb[0].mxu0
        %1181 = vdwg.mxu0
        %1183 = vrot.lane.b32.xlu0 %v1085, 8
        %v1184 = vpop.permute.xlu0 %1183
        %1187 = vrot.lane.b32.xlu0 %v1131, 16
        %v1188 = vpop.permute.xlu0 %1187
        %1191 = vrot.lane.b32.xlu0 %v1177, 24
        %v1192 = vpop.permute.xlu0 %1191
        %v1194 = vsel %vm753, %v1039, %v1184
        %v1195 = vsel %vm667, %v1194, %v1188
        %vm1196 = vcmask 195584
        %v1197 = vsel %vm1196, %v1195, %v1192
        %1198 = vst.msk [vmem:[%s455] sm:$0xff] %vm481, %v1197
        %s1199 = sand.u32 %s232, 1
        %s1200 = scalar_lea.sflag [#allocation4], %s1199
        %s1201 = sand.u32 %s232, 1
        %s1202 = smul.addr %s1201, 8
        %s1203 = scalar_lea.vmem [#allocation17], %s1202
        // Predicated region
        $region93: #{tpu_custom_call.1} parent=55 // pred_check
          %p1204 = pneg %p242
        $region94: #{tpu_custom_call.1} parent=55 // pred_check_branch
          %1206 = sbr.rel (%p1204) target = $region96
        $region95: #{tpu_custom_call.1} parent=55 // pred_region
          %s1208 = ssub.s32 128, 128
          %1209 = vsyncadd %s1200, %s1208
          %s1210 = smul.addr %s30, 128
          %s1211 = scalar_lea.hbm %s9, %s1210
          %s1213 = sshll.u32 %s1203, 4
          %s1214 = int_to_ptr.vmem [resolvable:$true] %s1213
          %1216 = dma.vmem_to_hbm [thread:$0]  %s1214, 128, %s1211, %s1200
        $region96: #{tpu_custom_call.1} parent=55 // pred_fallthru
          _
      $region56: #{tpu_custom_call.1} parent=5 // pred_fallthru
        _
      %p1217 = scmp.le.s32.totalorder 2, %s25
      // Predicated region
      $region97: #{tpu_custom_call.1} parent=5 // pred_check
        %p1218 = pneg %p1217
      $region98: #{tpu_custom_call.1} parent=5 // pred_check_branch
        %1220 = sbr.rel (%p1218) target = $region100
      $region99: #{tpu_custom_call.1} parent=5 // pred_region
        %s1221 = ssub.s32 %s25, 2
        // Predicated region
        $region101: #{tpu_custom_call.1} parent=99 // pred_check
          %p1222 = pneg %p248
        $region102: #{tpu_custom_call.1} parent=99 // pred_check_branch
          %1224 = sbr.rel (%p1222) target = $region104
        $region103: #{tpu_custom_call.1} parent=99 // pred_region
          %s1225 = sand.u32 %s233, 1
          %s1226 = scalar_lea.sflag [#allocation4], %s1225
          %s1227 = sand.u32 %s233, 1
          %s1228 = smul.addr %s1227, 8
          %s1229 = scalar_lea.vmem [#allocation17], %s1228
          %1230 = dma.done %s1226, 128
        $region104: #{tpu_custom_call.1} parent=99 // pred_fallthru
          _
      $region100: #{tpu_custom_call.1} parent=5 // pred_fallthru
        _
    $region6: #{tpu_custom_call.1} parent=1 // loop_footer
      %s29 = sadd.s32 1, %s25
    $region7: #{tpu_custom_call.1} parent=1 // loop_footer_branch
      %24 = sbr.rel target = $region3
    $region8: #{tpu_custom_call.1} parent=1 // loop_exit
      _
    %1231 = vsyncpa [#allocation3], 1
    %s1232 = scalar_lea.sflag [#allocation3], 1
    %1233 = vsyncpa %s1232, 1
    %1234 = vsyncpa [#allocation6], 1
    %1235 = vsyncpa [#allocation9], 1
    %1236 = vsyncpa [#allocation12], 1
    %1237 = vsyncpa [#allocation15], 1
    %1238 = vsyncpa [#allocation4], 1
    %s1239 = scalar_lea.sflag [#allocation4], 1
    %1240 = vsyncpa %s1239, 1

</llo_original>
